<compile_context>
chip_gen: v7x
topology: tpu7x:2x2x1
jax: 0.10.0
libtpu: 0.0.40
codegen_flags: <defaults>
</compile_context>

<pallas_src>
import functools

import jax
import jax.numpy as jnp
import numpy as np
from jax.experimental import pallas as pl
from jax.experimental.pallas import tpu as pltpu


def _ceil8(n):
    return -(-n // 8) * 8


# ---------------------------------------------------------------------------
# Single fused kernel (gridless): encoder -> image_trans^2 -> embed+GRU -> fuse
# ---------------------------------------------------------------------------
def _paired_fused_kernel(patches_ref, tok_ref, slab_ref, o_ref, *,
                         batch, t_len, hid, hw, feat, vocab, ckkp,
                         off_wm, off_cb, off_w2, off_b2, off_m, off_bih,
                         off_whh, off_bhh, off_fc, off_fcb):
    f32 = jnp.float32
    h3 = 3 * hid
    bhw = batch * hw

    # ---- encoder: conv3x3 as im2col matmul + bias + ReLU ----
    wm = slab_ref[off_wm:off_wm + ckkp, 0:feat]
    cb = slab_ref[off_cb:off_cb + 1, 0:feat]
    y = jnp.dot(patches_ref[...], wm, preferred_element_type=f32) + cb
    y = jnp.maximum(y, 0.0)                                            # (B*HW, F)

    # ---- global average pool as a matmul; pooling matrix built from iota ----
    ridx = jax.lax.broadcasted_iota(jnp.int32, (batch, bhw), 1)
    lo = jax.lax.broadcasted_iota(jnp.int32, (batch, bhw), 0) * hw
    pool = jnp.where((ridx >= lo) & (ridx < lo + hw), 1.0 / hw, 0.0).astype(f32)
    enc = jnp.dot(pool, y, preferred_element_type=f32)                 # (B, F)

    # ---- image_trans applied twice (torch-forward quirk), folded at prep ----
    w2 = slab_ref[off_w2:off_w2 + feat, 0:vocab]
    b2 = slab_ref[off_b2:off_b2 + 1, 0:vocab]
    img2 = jnp.dot(enc, w2, preferred_element_type=f32) + b2           # (B, V), B == T-1

    # ---- embedding folded into GRU input projection; one-hot built from iota ----
    onehot = (tok_ref[...] == jax.lax.broadcasted_iota(
        jnp.int32, (t_len * batch, vocab), 1)).astype(f32)             # rows t*B + b
    m = slab_ref[off_m:off_m + vocab, 0:h3]
    bih = slab_ref[off_bih:off_bih + 1, 0:h3]
    gi_all = jnp.dot(onehot, m, preferred_element_type=f32) + bih      # (T*B, 3H)

    whh = slab_ref[off_whh:off_whh + hid, 0:h3]
    bhh = slab_ref[off_bhh:off_bhh + 1, 0:h3]

    # ---- GRU recurrence: hidden state in vregs, static unroll ----
    h = jnp.zeros((batch, hid), f32)
    hs = []
    for t in range(t_len):                      # only h @ whh is on the serial path
        gi = gi_all[t * batch:(t + 1) * batch, :]
        gh = jnp.dot(h, whh, preferred_element_type=f32) + bhh
        r = jax.nn.sigmoid(gi[:, 0:hid] + gh[:, 0:hid])
        z = jax.nn.sigmoid(gi[:, hid:2 * hid] + gh[:, hid:2 * hid])
        n = jnp.tanh(gi[:, 2 * hid:] + r * gh[:, 2 * hid:])
        h = (1.0 - z) * n + z * h
        hs.append(h)

    # ---- text_trans for ALL timesteps as one block-diagonal matmul; the result is
    #      the lane-dense output slab.  Fuse lane-tiled fc bias and the torch
    #      time-axis broadcast of img2 (out[b, t, v] = text[b,t,v] + img2[t, v]). ----
    hcat = jnp.concatenate(hs, axis=1)                                 # (B, (T-1)*H)
    fcblk = slab_ref[off_fc:off_fc + t_len * hid, 0:t_len * vocab]
    fcb = slab_ref[off_fcb:off_fcb + 1, 0:t_len * vocab]
    img_row = jnp.concatenate([img2[t:t + 1, :] for t in range(t_len)], axis=1)
    o_ref[...] = jnp.dot(hcat, fcblk, preferred_element_type=f32) + fcb + img_row


# ---------------------------------------------------------------------------
# One-time parameter prep: algebraic folds + single lane-dense weight slab
# ---------------------------------------------------------------------------
def prepare_paired(params, t_len):
    feat, c, k, _ = params["conv_w"].shape
    vocab, emb = params["embed"].shape
    hid = params["gru_whh"].shape[1]
    # forward() applies image_trans to its own output -> needs feature == vocab_size
    assert feat == vocab, "Paired.forward requires feature == vocab_size"
    assert params["fc_w"].shape == (vocab, hid)

    ckk = c * k * k
    ckkp = _ceil8(ckk)                       # pad contraction dim (27 -> 32)

    wm = np.zeros((ckkp, feat), np.float32)
    wm[:ckk, :] = np.asarray(params["conv_w"], np.float32).reshape(feat, ckk).T
    cb = np.asarray(params["conv_b"], np.float32).reshape(1, feat)

    wt = np.asarray(params["img_w"], np.float32).T                     # (F, V)
    b1 = np.asarray(params["img_b"], np.float32)
    w2 = wt @ wt                                                       # folded W
    b2 = (b1 @ wt + b1).reshape(1, vocab)                              # folded bias

    m = (np.asarray(params["embed"], np.float32)
         @ np.asarray(params["gru_wih"], np.float32).T)                # (V, 3H)
    bih = np.asarray(params["gru_bih"], np.float32).reshape(1, 3 * hid)
    whh = np.asarray(params["gru_whh"], np.float32).T                  # (H, 3H)
    bhh = np.asarray(params["gru_bhh"], np.float32).reshape(1, 3 * hid)

    fct = np.asarray(params["fc_w"], np.float32).T                     # (H, V)
    fcblk = np.zeros((t_len * hid, t_len * vocab), np.float32)
    for t in range(t_len):
        fcblk[t * hid:(t + 1) * hid, t * vocab:(t + 1) * vocab] = fct
    fcb = np.tile(np.asarray(params["fc_b"], np.float32),
                  t_len).reshape(1, t_len * vocab)

    pieces = [wm, cb, w2, b2, m, bih, whh, bhh, fcblk, fcb]
    width = max(128, t_len * vocab, 3 * hid, feat)
    offs, row = [], 0
    for a in pieces:                         # 8-aligned row offsets for clean loads
        row = _ceil8(row)
        offs.append(row)
        row += a.shape[0]
    slab = np.zeros((_ceil8(row), width), np.float32)
    for off, a in zip(offs, pieces):
        slab[off:off + a.shape[0], :a.shape[1]] = a

    layout = dict(
        t_len=t_len, hid=hid, feat=feat, vocab=vocab, ckkp=ckkp, ksize=k,
        off_wm=offs[0], off_cb=offs[1], off_w2=offs[2], off_b2=offs[3],
        off_m=offs[4], off_bih=offs[5], off_whh=offs[6], off_bhh=offs[7],
        off_fc=offs[8], off_fcb=offs[9],
    )
    return jnp.asarray(slab), layout


# ---------------------------------------------------------------------------
# Forward factory: returns a jitted forward(image, caption, weight_slab)
# ---------------------------------------------------------------------------
def make_paired_forward(params, t_len):
    slab, lo = prepare_paired(params, t_len)
    ksize = lo["ksize"]
    vocab, ckkp = lo["vocab"], lo["ckkp"]
    kern_kwargs = {k: v for k, v in lo.items() if k != "ksize"}

    def forward(image, caption, w_slab):
        b, c, hh, ww = image.shape
        hw = hh * ww
        ckk = c * ksize * ksize
        assert caption.shape[1] - 1 == t_len
        # torch broadcast of (B,T-1,V) + (B,V) in forward() requires T-1 == B
        assert b == t_len, "Paired.forward requires batch == caption_len - 1"

        # per-call XLA prep #1: im2col (activation path only; fused by jit)
        pad = ksize // 2
        xp = jnp.pad(image, ((0, 0), (0, 0), (pad, pad), (pad, pad)))
        taps = [xp[:, :, i:i + hh, j:j + ww]
                for i in range(ksize) for j in range(ksize)]
        patches = jnp.stack(taps, axis=2)                    # (B, C, K*K, H, W)
        patches = jnp.transpose(patches, (0, 3, 4, 1, 2))    # (B, H, W, C, K*K)
        patches = patches.reshape(b * hw, ckk).astype(jnp.float32)
        patches = jnp.pad(patches, ((0, 0), (0, ckkp - ckk)))

        # per-call XLA prep #2: time-major token column (rows ordered t*B + b)
        tok = caption[:, :-1].astype(jnp.int32).T.reshape(t_len * b, 1)

        kernel = functools.partial(_paired_fused_kernel, batch=b, hw=hw,
                                   **kern_kwargs)
        out_flat = pl.pallas_call(
            kernel,
            out_shape=jax.ShapeDtypeStruct((b, t_len * vocab), jnp.float32),
            in_specs=[pl.BlockSpec(memory_space=pltpu.MemorySpace.VMEM)] * 3,
            out_specs=pl.BlockSpec(memory_space=pltpu.MemorySpace.VMEM),
        )(patches, tok, w_slab)

        # layout plumbing only: lane-dense (B, (T-1)*V) slab -> (B, T-1, V)
        return out_flat.reshape(b, t_len, vocab)

    return jax.jit(forward), slab


# ---------------------------------------------------------------------------
# Pure-JAX reference (mirrors the PyTorch forward) for a correctness check
# ---------------------------------------------------------------------------
def reference_forward(image, caption, params):
    conv = jax.lax.conv_general_dilated(
        image, params["conv_w"], (1, 1), "SAME",
        dimension_numbers=("NCHW", "OIHW", "NCHW"))
    conv = conv + params["conv_b"][None, :, None, None]
    enc = jnp.maximum(conv, 0.0).mean(axis=(2, 3))
    img1 = enc @ params["img_w"].T + params["img_b"]
    img2 = img1 @ params["img_w"].T + params["img_b"]

    tok = caption[:, :-1]
    emb = jnp.take(params["embed"], tok, axis=0)
    hid = params["gru_whh"].shape[1]

    def step(h, x_t):
        gi = x_t @ params["gru_wih"].T + params["gru_bih"]
        gh = h @ params["gru_whh"].T + params["gru_bhh"]
        r = jax.nn.sigmoid(gi[:, :hid] + gh[:, :hid])
        z = jax.nn.sigmoid(gi[:, hid:2 * hid] + gh[:, hid:2 * hid])
        n = jnp.tanh(gi[:, 2 * hid:] + r * gh[:, 2 * hid:])
        h = (1.0 - z) * n + z * h
        return h, h

    h0 = jnp.zeros((tok.shape[0], hid), jnp.float32)
    _, ys = jax.lax.scan(step, h0, jnp.swapaxes(emb, 0, 1))
    rnn = jnp.swapaxes(ys, 0, 1)                          # (B, T-1, H)
    text = rnn @ params["fc_w"].T + params["fc_b"]        # (B, T-1, V)
    return text + img2                                    # torch broadcast (T-1 == B)


# TODO(synk): predict() (greedy decode with a data-dependent Python while-loop) is not
# part of the requested forward pass and is left unimplemented.

if __name__ == "__main__":
    B, C, H, W = 4, 3, 8, 8
    FEATURE = VOCAB = 32    # image_trans applied twice -> feature must equal vocab_size
    EMB, HID = 16, 32
    T = B + 1               # torch broadcast in forward requires T-1 == B

    key = jax.random.PRNGKey(0)
    ks = jax.random.split(key, 13)
    params = {
        "conv_w": 0.2 * jax.random.normal(ks[0], (FEATURE, C, 3, 3), jnp.float32),
        "conv_b": 0.1 * jax.random.normal(ks[1], (FEATURE,), jnp.float32),
        "img_w": 0.2 * jax.random.normal(ks[2], (VOCAB, FEATURE), jnp.float32),
        "img_b": 0.1 * jax.random.normal(ks[3], (VOCAB,), jnp.float32),
        "embed": 0.5 * jax.random.normal(ks[4], (VOCAB, EMB), jnp.float32),
        "gru_wih": 0.3 * jax.random.normal(ks[5], (3 * HID, EMB), jnp.float32),
        "gru_whh": 0.3 * jax.random.normal(ks[6], (3 * HID, HID), jnp.float32),
        "gru_bih": 0.1 * jax.random.normal(ks[7], (3 * HID,), jnp.float32),
        "gru_bhh": 0.1 * jax.random.normal(ks[8], (3 * HID,), jnp.float32),
        "fc_w": 0.2 * jax.random.normal(ks[9], (VOCAB, HID), jnp.float32),
        "fc_b": 0.1 * jax.random.normal(ks[10], (VOCAB,), jnp.float32),
    }
    image = jax.random.normal(ks[11], (B, C, H, W), jnp.float32)
    caption = jax.random.randint(ks[12], (B, T), 0, VOCAB, dtype=jnp.int32)

    paired_forward, weight_slab = make_paired_forward(params, t_len=T - 1)

    out = jax.block_until_ready(paired_forward(image, caption, weight_slab))
    ref = jax.block_until_ready(reference_forward(image, caption, params))
    assert out.shape == (B, T - 1, VOCAB), out.shape
    np.testing.assert_allclose(np.asarray(out), np.asarray(ref), atol=2e-2, rtol=2e-2)
    print("KERNEL_OK")
</pallas_src>

<mosaic_0001>
module attributes {stable_mosaic.version = 11 : i64} {
  func.func @_paired_fused_kernel(%arg0: memref<256x32xf32, #tpu.memory_space<vmem>>, %arg1: memref<16x1xi32, #tpu.memory_space<vmem>>, %arg2: memref<296x128xf32, #tpu.memory_space<vmem>>, %arg3: memref<4x128xf32, #tpu.memory_space<vmem>>) attributes {dimension_semantics = [], scalar_prefetch = 0 : i64, scratch_operands = 0 : i64, tpu.core_type = #tpu.core_type<tc>} {
    %c0 = arith.constant 0 : index
    %c0_0 = arith.constant 0 : index
    %0 = vector.load %arg2[%c0, %c0_0] : memref<296x128xf32, #tpu.memory_space<vmem>>, vector<32x32xf32>
    %c32 = arith.constant 32 : index
    %c0_1 = arith.constant 0 : index
    %1 = vector.load %arg2[%c32, %c0_1] : memref<296x128xf32, #tpu.memory_space<vmem>>, vector<1x32xf32>
    %c0_2 = arith.constant 0 : index
    %c0_3 = arith.constant 0 : index
    %2 = vector.load %arg0[%c0_2, %c0_3] : memref<256x32xf32, #tpu.memory_space<vmem>>, vector<256x32xf32>
    %cst = arith.constant dense<0.000000e+00> : vector<256x32xf32>
    %3 = tpu.matmul %2, %0, %cst {dimension_numbers = #tpu.dot_dimension_numbers<[1], [0], [0], [1], [0, 0, 1, 1], [], []>} : vector<256x32xf32>, vector<32x32xf32>, vector<256x32xf32> -> vector<256x32xf32>
    %4 = vector.broadcast %1 : vector<1x32xf32> to vector<256x32xf32>
    %5 = arith.addf %3, %4 : vector<256x32xf32>
    %cst_4 = arith.constant 0.000000e+00 : f32
    %6 = vector.broadcast %cst_4 : f32 to vector<256x32xf32>
    %7 = arith.maximumf %5, %6 : vector<256x32xf32>
    %8 = tpu.iota {dimensions = array<i32: 1>} : vector<4x256xi32>
    %9 = tpu.iota {dimensions = array<i32: 0>} : vector<4x256xi32>
    %c64_i32 = arith.constant 64 : i32
    %10 = vector.broadcast %c64_i32 : i32 to vector<4x256xi32>
    %11 = arith.muli %9, %10 : vector<4x256xi32>
    %12 = arith.cmpi sge, %8, %11 : vector<4x256xi32>
    %c64_i32_5 = arith.constant 64 : i32
    %13 = vector.broadcast %c64_i32_5 : i32 to vector<4x256xi32>
    %14 = arith.addi %11, %13 : vector<4x256xi32>
    %15 = arith.cmpi slt, %8, %14 : vector<4x256xi32>
    %16 = arith.andi %12, %15 : vector<4x256xi1>
    %cst_6 = arith.constant 1.562500e-02 : f32
    %cst_7 = arith.constant 0.000000e+00 : f32
    %17 = vector.broadcast %cst_6 : f32 to vector<4x256xf32>
    %18 = vector.broadcast %cst_7 : f32 to vector<4x256xf32>
    %19 = arith.select %16, %17, %18 : vector<4x256xi1>, vector<4x256xf32>
    %cst_8 = arith.constant dense<0.000000e+00> : vector<4x32xf32>
    %20 = tpu.matmul %19, %7, %cst_8 {dimension_numbers = #tpu.dot_dimension_numbers<[1], [0], [0], [1], [0, 0, 1, 1], [], []>} : vector<4x256xf32>, vector<256x32xf32>, vector<4x32xf32> -> vector<4x32xf32>
    %c40 = arith.constant 40 : index
    %c0_9 = arith.constant 0 : index
    %21 = vector.load %arg2[%c40, %c0_9] : memref<296x128xf32, #tpu.memory_space<vmem>>, vector<32x32xf32>
    %c72 = arith.constant 72 : index
    %c0_10 = arith.constant 0 : index
    %22 = vector.load %arg2[%c72, %c0_10] : memref<296x128xf32, #tpu.memory_space<vmem>>, vector<1x32xf32>
    %cst_11 = arith.constant dense<0.000000e+00> : vector<4x32xf32>
    %23 = tpu.matmul %20, %21, %cst_11 {dimension_numbers = #tpu.dot_dimension_numbers<[1], [0], [0], [1], [0, 0, 1, 1], [], []>} : vector<4x32xf32>, vector<32x32xf32>, vector<4x32xf32> -> vector<4x32xf32>
    %24 = vector.broadcast %22 : vector<1x32xf32> to vector<4x32xf32>
    %25 = arith.addf %23, %24 : vector<4x32xf32>
    %c0_12 = arith.constant 0 : index
    %c0_13 = arith.constant 0 : index
    %26 = vector.load %arg1[%c0_12, %c0_13] : memref<16x1xi32, #tpu.memory_space<vmem>>, vector<16x1xi32>
    %27 = tpu.iota {dimensions = array<i32: 1>} : vector<16x32xi32>
    %28 = vector.broadcast %26 : vector<16x1xi32> to vector<16x32xi32>
    %29 = arith.cmpi eq, %28, %27 : vector<16x32xi32>
    %30 = arith.extui %29 : vector<16x32xi1> to vector<16x32xi32>
    %31 = arith.sitofp %30 : vector<16x32xi32> to vector<16x32xf32>
    %c80 = arith.constant 80 : index
    %c0_14 = arith.constant 0 : index
    %32 = vector.load %arg2[%c80, %c0_14] : memref<296x128xf32, #tpu.memory_space<vmem>>, vector<32x96xf32>
    %c112 = arith.constant 112 : index
    %c0_15 = arith.constant 0 : index
    %33 = vector.load %arg2[%c112, %c0_15] : memref<296x128xf32, #tpu.memory_space<vmem>>, vector<1x96xf32>
    %cst_16 = arith.constant dense<0.000000e+00> : vector<16x96xf32>
    %34 = tpu.matmul %31, %32, %cst_16 {dimension_numbers = #tpu.dot_dimension_numbers<[1], [0], [0], [1], [0, 0, 1, 1], [], []>} : vector<16x32xf32>, vector<32x96xf32>, vector<16x96xf32> -> vector<16x96xf32>
    %35 = vector.broadcast %33 : vector<1x96xf32> to vector<16x96xf32>
    %36 = arith.addf %34, %35 : vector<16x96xf32>
    %c120 = arith.constant 120 : index
    %c0_17 = arith.constant 0 : index
    %37 = vector.load %arg2[%c120, %c0_17] : memref<296x128xf32, #tpu.memory_space<vmem>>, vector<32x96xf32>
    %c152 = arith.constant 152 : index
    %c0_18 = arith.constant 0 : index
    %38 = vector.load %arg2[%c152, %c0_18] : memref<296x128xf32, #tpu.memory_space<vmem>>, vector<1x96xf32>
    %cst_19 = arith.constant 0.000000e+00 : f32
    %39 = vector.broadcast %cst_19 : f32 to vector<4x32xf32>
    %40 = vector.extract_strided_slice %36 {offsets = [0, 0], sizes = [4, 96], strides = [1, 1]} : vector<16x96xf32> to vector<4x96xf32>
    %cst_20 = arith.constant dense<0.000000e+00> : vector<4x96xf32>
    %41 = tpu.matmul %39, %37, %cst_20 {dimension_numbers = #tpu.dot_dimension_numbers<[1], [0], [0], [1], [0, 0, 1, 1], [], []>} : vector<4x32xf32>, vector<32x96xf32>, vector<4x96xf32> -> vector<4x96xf32>
    %42 = vector.broadcast %38 : vector<1x96xf32> to vector<4x96xf32>
    %43 = arith.addf %41, %42 : vector<4x96xf32>
    %44 = vector.extract_strided_slice %40 {offsets = [0, 0], sizes = [4, 32], strides = [1, 1]} : vector<4x96xf32> to vector<4x32xf32>
    %45 = vector.extract_strided_slice %43 {offsets = [0, 0], sizes = [4, 32], strides = [1, 1]} : vector<4x96xf32> to vector<4x32xf32>
    %46 = arith.addf %44, %45 : vector<4x32xf32>
    %47 = arith.negf %46 : vector<4x32xf32>
    %48 = math.exp %47 : vector<4x32xf32>
    %cst_21 = arith.constant 1.000000e+00 : f32
    %49 = vector.broadcast %cst_21 : f32 to vector<4x32xf32>
    %50 = arith.addf %49, %48 : vector<4x32xf32>
    %51 = arith.divf %49, %50 : vector<4x32xf32>
    %52 = vector.extract_strided_slice %40 {offsets = [0, 32], sizes = [4, 32], strides = [1, 1]} : vector<4x96xf32> to vector<4x32xf32>
    %53 = vector.extract_strided_slice %43 {offsets = [0, 32], sizes = [4, 32], strides = [1, 1]} : vector<4x96xf32> to vector<4x32xf32>
    %54 = arith.addf %52, %53 : vector<4x32xf32>
    %55 = arith.negf %54 : vector<4x32xf32>
    %56 = math.exp %55 : vector<4x32xf32>
    %cst_22 = arith.constant 1.000000e+00 : f32
    %57 = vector.broadcast %cst_22 : f32 to vector<4x32xf32>
    %58 = arith.addf %57, %56 : vector<4x32xf32>
    %59 = arith.divf %57, %58 : vector<4x32xf32>
    %60 = vector.extract_strided_slice %40 {offsets = [0, 64], sizes = [4, 32], strides = [1, 1]} : vector<4x96xf32> to vector<4x32xf32>
    %61 = vector.extract_strided_slice %43 {offsets = [0, 64], sizes = [4, 32], strides = [1, 1]} : vector<4x96xf32> to vector<4x32xf32>
    %62 = arith.mulf %51, %61 : vector<4x32xf32>
    %63 = arith.addf %60, %62 : vector<4x32xf32>
    %64 = math.tanh %63 : vector<4x32xf32>
    %cst_23 = arith.constant 1.000000e+00 : f32
    %65 = vector.broadcast %cst_23 : f32 to vector<4x32xf32>
    %66 = arith.subf %65, %59 : vector<4x32xf32>
    %67 = arith.mulf %66, %64 : vector<4x32xf32>
    %68 = arith.mulf %59, %39 : vector<4x32xf32>
    %69 = arith.addf %67, %68 : vector<4x32xf32>
    %70 = vector.extract_strided_slice %36 {offsets = [4, 0], sizes = [4, 96], strides = [1, 1]} : vector<16x96xf32> to vector<4x96xf32>
    %cst_24 = arith.constant dense<0.000000e+00> : vector<4x96xf32>
    %71 = tpu.matmul %69, %37, %cst_24 {dimension_numbers = #tpu.dot_dimension_numbers<[1], [0], [0], [1], [0, 0, 1, 1], [], []>} : vector<4x32xf32>, vector<32x96xf32>, vector<4x96xf32> -> vector<4x96xf32>
    %72 = vector.broadcast %38 : vector<1x96xf32> to vector<4x96xf32>
    %73 = arith.addf %71, %72 : vector<4x96xf32>
    %74 = vector.extract_strided_slice %70 {offsets = [0, 0], sizes = [4, 32], strides = [1, 1]} : vector<4x96xf32> to vector<4x32xf32>
    %75 = vector.extract_strided_slice %73 {offsets = [0, 0], sizes = [4, 32], strides = [1, 1]} : vector<4x96xf32> to vector<4x32xf32>
    %76 = arith.addf %74, %75 : vector<4x32xf32>
    %77 = arith.negf %76 : vector<4x32xf32>
    %78 = math.exp %77 : vector<4x32xf32>
    %cst_25 = arith.constant 1.000000e+00 : f32
    %79 = vector.broadcast %cst_25 : f32 to vector<4x32xf32>
    %80 = arith.addf %79, %78 : vector<4x32xf32>
    %81 = arith.divf %79, %80 : vector<4x32xf32>
    %82 = vector.extract_strided_slice %70 {offsets = [0, 32], sizes = [4, 32], strides = [1, 1]} : vector<4x96xf32> to vector<4x32xf32>
    %83 = vector.extract_strided_slice %73 {offsets = [0, 32], sizes = [4, 32], strides = [1, 1]} : vector<4x96xf32> to vector<4x32xf32>
    %84 = arith.addf %82, %83 : vector<4x32xf32>
    %85 = arith.negf %84 : vector<4x32xf32>
    %86 = math.exp %85 : vector<4x32xf32>
    %cst_26 = arith.constant 1.000000e+00 : f32
    %87 = vector.broadcast %cst_26 : f32 to vector<4x32xf32>
    %88 = arith.addf %87, %86 : vector<4x32xf32>
    %89 = arith.divf %87, %88 : vector<4x32xf32>
    %90 = vector.extract_strided_slice %70 {offsets = [0, 64], sizes = [4, 32], strides = [1, 1]} : vector<4x96xf32> to vector<4x32xf32>
    %91 = vector.extract_strided_slice %73 {offsets = [0, 64], sizes = [4, 32], strides = [1, 1]} : vector<4x96xf32> to vector<4x32xf32>
    %92 = arith.mulf %81, %91 : vector<4x32xf32>
    %93 = arith.addf %90, %92 : vector<4x32xf32>
    %94 = math.tanh %93 : vector<4x32xf32>
    %cst_27 = arith.constant 1.000000e+00 : f32
    %95 = vector.broadcast %cst_27 : f32 to vector<4x32xf32>
    %96 = arith.subf %95, %89 : vector<4x32xf32>
    %97 = arith.mulf %96, %94 : vector<4x32xf32>
    %98 = arith.mulf %89, %69 : vector<4x32xf32>
    %99 = arith.addf %97, %98 : vector<4x32xf32>
    %100 = vector.extract_strided_slice %36 {offsets = [8, 0], sizes = [4, 96], strides = [1, 1]} : vector<16x96xf32> to vector<4x96xf32>
    %cst_28 = arith.constant dense<0.000000e+00> : vector<4x96xf32>
    %101 = tpu.matmul %99, %37, %cst_28 {dimension_numbers = #tpu.dot_dimension_numbers<[1], [0], [0], [1], [0, 0, 1, 1], [], []>} : vector<4x32xf32>, vector<32x96xf32>, vector<4x96xf32> -> vector<4x96xf32>
    %102 = vector.broadcast %38 : vector<1x96xf32> to vector<4x96xf32>
    %103 = arith.addf %101, %102 : vector<4x96xf32>
    %104 = vector.extract_strided_slice %100 {offsets = [0, 0], sizes = [4, 32], strides = [1, 1]} : vector<4x96xf32> to vector<4x32xf32>
    %105 = vector.extract_strided_slice %103 {offsets = [0, 0], sizes = [4, 32], strides = [1, 1]} : vector<4x96xf32> to vector<4x32xf32>
    %106 = arith.addf %104, %105 : vector<4x32xf32>
    %107 = arith.negf %106 : vector<4x32xf32>
    %108 = math.exp %107 : vector<4x32xf32>
    %cst_29 = arith.constant 1.000000e+00 : f32
    %109 = vector.broadcast %cst_29 : f32 to vector<4x32xf32>
    %110 = arith.addf %109, %108 : vector<4x32xf32>
    %111 = arith.divf %109, %110 : vector<4x32xf32>
    %112 = vector.extract_strided_slice %100 {offsets = [0, 32], sizes = [4, 32], strides = [1, 1]} : vector<4x96xf32> to vector<4x32xf32>
    %113 = vector.extract_strided_slice %103 {offsets = [0, 32], sizes = [4, 32], strides = [1, 1]} : vector<4x96xf32> to vector<4x32xf32>
    %114 = arith.addf %112, %113 : vector<4x32xf32>
    %115 = arith.negf %114 : vector<4x32xf32>
    %116 = math.exp %115 : vector<4x32xf32>
    %cst_30 = arith.constant 1.000000e+00 : f32
    %117 = vector.broadcast %cst_30 : f32 to vector<4x32xf32>
    %118 = arith.addf %117, %116 : vector<4x32xf32>
    %119 = arith.divf %117, %118 : vector<4x32xf32>
    %120 = vector.extract_strided_slice %100 {offsets = [0, 64], sizes = [4, 32], strides = [1, 1]} : vector<4x96xf32> to vector<4x32xf32>
    %121 = vector.extract_strided_slice %103 {offsets = [0, 64], sizes = [4, 32], strides = [1, 1]} : vector<4x96xf32> to vector<4x32xf32>
    %122 = arith.mulf %111, %121 : vector<4x32xf32>
    %123 = arith.addf %120, %122 : vector<4x32xf32>
    %124 = math.tanh %123 : vector<4x32xf32>
    %cst_31 = arith.constant 1.000000e+00 : f32
    %125 = vector.broadcast %cst_31 : f32 to vector<4x32xf32>
    %126 = arith.subf %125, %119 : vector<4x32xf32>
    %127 = arith.mulf %126, %124 : vector<4x32xf32>
    %128 = arith.mulf %119, %99 : vector<4x32xf32>
    %129 = arith.addf %127, %128 : vector<4x32xf32>
    %130 = vector.extract_strided_slice %36 {offsets = [12, 0], sizes = [4, 96], strides = [1, 1]} : vector<16x96xf32> to vector<4x96xf32>
    %cst_32 = arith.constant dense<0.000000e+00> : vector<4x96xf32>
    %131 = tpu.matmul %129, %37, %cst_32 {dimension_numbers = #tpu.dot_dimension_numbers<[1], [0], [0], [1], [0, 0, 1, 1], [], []>} : vector<4x32xf32>, vector<32x96xf32>, vector<4x96xf32> -> vector<4x96xf32>
    %132 = vector.broadcast %38 : vector<1x96xf32> to vector<4x96xf32>
    %133 = arith.addf %131, %132 : vector<4x96xf32>
    %134 = vector.extract_strided_slice %130 {offsets = [0, 0], sizes = [4, 32], strides = [1, 1]} : vector<4x96xf32> to vector<4x32xf32>
    %135 = vector.extract_strided_slice %133 {offsets = [0, 0], sizes = [4, 32], strides = [1, 1]} : vector<4x96xf32> to vector<4x32xf32>
    %136 = arith.addf %134, %135 : vector<4x32xf32>
    %137 = arith.negf %136 : vector<4x32xf32>
    %138 = math.exp %137 : vector<4x32xf32>
    %cst_33 = arith.constant 1.000000e+00 : f32
    %139 = vector.broadcast %cst_33 : f32 to vector<4x32xf32>
    %140 = arith.addf %139, %138 : vector<4x32xf32>
    %141 = arith.divf %139, %140 : vector<4x32xf32>
    %142 = vector.extract_strided_slice %130 {offsets = [0, 32], sizes = [4, 32], strides = [1, 1]} : vector<4x96xf32> to vector<4x32xf32>
    %143 = vector.extract_strided_slice %133 {offsets = [0, 32], sizes = [4, 32], strides = [1, 1]} : vector<4x96xf32> to vector<4x32xf32>
    %144 = arith.addf %142, %143 : vector<4x32xf32>
    %145 = arith.negf %144 : vector<4x32xf32>
    %146 = math.exp %145 : vector<4x32xf32>
    %cst_34 = arith.constant 1.000000e+00 : f32
    %147 = vector.broadcast %cst_34 : f32 to vector<4x32xf32>
    %148 = arith.addf %147, %146 : vector<4x32xf32>
    %149 = arith.divf %147, %148 : vector<4x32xf32>
    %150 = vector.extract_strided_slice %130 {offsets = [0, 64], sizes = [4, 32], strides = [1, 1]} : vector<4x96xf32> to vector<4x32xf32>
    %151 = vector.extract_strided_slice %133 {offsets = [0, 64], sizes = [4, 32], strides = [1, 1]} : vector<4x96xf32> to vector<4x32xf32>
    %152 = arith.mulf %141, %151 : vector<4x32xf32>
    %153 = arith.addf %150, %152 : vector<4x32xf32>
    %154 = math.tanh %153 : vector<4x32xf32>
    %cst_35 = arith.constant 1.000000e+00 : f32
    %155 = vector.broadcast %cst_35 : f32 to vector<4x32xf32>
    %156 = arith.subf %155, %149 : vector<4x32xf32>
    %157 = arith.mulf %156, %154 : vector<4x32xf32>
    %158 = arith.mulf %149, %129 : vector<4x32xf32>
    %159 = arith.addf %157, %158 : vector<4x32xf32>
    %160 = tpu.concatenate %69, %99, %129, %159 in 1 : vector<4x32xf32>, vector<4x32xf32>, vector<4x32xf32>, vector<4x32xf32> -> vector<4x128xf32>
    %c160 = arith.constant 160 : index
    %c0_36 = arith.constant 0 : index
    %161 = vector.load %arg2[%c160, %c0_36] : memref<296x128xf32, #tpu.memory_space<vmem>>, vector<128x128xf32>
    %c288 = arith.constant 288 : index
    %c0_37 = arith.constant 0 : index
    %162 = vector.load %arg2[%c288, %c0_37] : memref<296x128xf32, #tpu.memory_space<vmem>>, vector<1x128xf32>
    %163 = vector.extract_strided_slice %25 {offsets = [0, 0], sizes = [1, 32], strides = [1, 1]} : vector<4x32xf32> to vector<1x32xf32>
    %164 = vector.extract_strided_slice %25 {offsets = [1, 0], sizes = [1, 32], strides = [1, 1]} : vector<4x32xf32> to vector<1x32xf32>
    %165 = vector.extract_strided_slice %25 {offsets = [2, 0], sizes = [1, 32], strides = [1, 1]} : vector<4x32xf32> to vector<1x32xf32>
    %166 = vector.extract_strided_slice %25 {offsets = [3, 0], sizes = [1, 32], strides = [1, 1]} : vector<4x32xf32> to vector<1x32xf32>
    %167 = tpu.concatenate %163, %164, %165, %166 in 1 : vector<1x32xf32>, vector<1x32xf32>, vector<1x32xf32>, vector<1x32xf32> -> vector<1x128xf32>
    %cst_38 = arith.constant dense<0.000000e+00> : vector<4x128xf32>
    %168 = tpu.matmul %160, %161, %cst_38 {dimension_numbers = #tpu.dot_dimension_numbers<[1], [0], [0], [1], [0, 0, 1, 1], [], []>} : vector<4x128xf32>, vector<128x128xf32>, vector<4x128xf32> -> vector<4x128xf32>
    %169 = vector.broadcast %162 : vector<1x128xf32> to vector<4x128xf32>
    %170 = arith.addf %168, %169 : vector<4x128xf32>
    %171 = vector.broadcast %167 : vector<1x128xf32> to vector<4x128xf32>
    %172 = arith.addf %170, %171 : vector<4x128xf32>
    %c0_39 = arith.constant 0 : index
    %c0_40 = arith.constant 0 : index
    %173 = vector.load %arg3[%c0_39, %c0_40] : memref<4x128xf32, #tpu.memory_space<vmem>>, vector<4x128xf32>
    tpu.vector_store %arg3[%c0_39, %c0_40], %172 {strides = array<i32>} : memref<4x128xf32, #tpu.memory_space<vmem>>, vector<4x128xf32>,
    return
  }
}

</mosaic_0001>

<llo_original>
// kernel: forward.1
$region0: #{forward.1}
  #allocation0 [shape = 'u32[]', space=smem, size = 0x4, offset = 0x4, fixed_abs, tag = 'smem constant byte address 0x4 - core index']
  #allocation1 [shape = 'u32[144,128]{1,0:T(1,128)}', space=vmem, size = 0x12000, scoped, tag = 'internal scratch']
  %s0 = inlined_call_operand.vmem [shape: f32[256,32], index: 0, kind: input, shape index: {}]
  %s1 = inlined_call_operand.vmem [shape: s32[16,1], index: 1, kind: input, shape index: {}]
  %s2 = inlined_call_operand.vmem [shape: f32[296,128], index: 2, kind: input, shape index: {}]
  %s3 = inlined_call_operand.vmem [shape: f32[4,128], index: 3, kind: output, shape index: {}]
  %s4 = sld [smem:[#allocation0]]
  $region22: #{forward.1} parent=0
    _
  %s6 = ssub.s32 1, %s4
  %s7 = scalar_select 0, %s6, %s4
  // Predicated region
  $region2: #{forward.1} parent=0 // pred_check
    _
  $region3: #{forward.1} parent=0 // pred_check_branch
    %9 = sbr.rel (0) target = $region5
  $region4: #{forward.1} parent=0 // pred_region
    _
  $region5: #{forward.1} parent=0 // pred_fallthru
    _
  // Predicated region
  $region6: #{forward.1} parent=0 // pred_check
    _
  $region7: #{forward.1} parent=0 // pred_check_branch
    %11 = sbr.rel (0) target = $region9
  $region8: #{forward.1} parent=0 // pred_region
    _
  $region9: #{forward.1} parent=0 // pred_fallthru
    _
  // Predicated region
  $region10: #{forward.1} parent=0 // pred_check
    _
  $region11: #{forward.1} parent=0 // pred_check_branch
    %13 = sbr.rel (0) target = $region13
  $region12: #{forward.1} parent=0 // pred_region
    _
  $region13: #{forward.1} parent=0 // pred_fallthru
    _
  %v14 = vld [vmem:[%s2] sm:$0xff]
  %v15 = vld [vmem:[%s2 + $0x8] sm:$0xff]
  %v16 = vld [vmem:[%s2 + $0x10] sm:$0xff]
  %v17 = vld [vmem:[%s2 + $0x18] sm:$0xff]
  %v18 = vld [vmem:[%s2 + $0x20] sm:$0x1]
  %v19 = vld [vmem:[%s0] sm:$0xff]
  %v20 = vld [vmem:[%s0 + $0x8] sm:$0xff]
  %v21 = vld [vmem:[%s0 + $0x10] sm:$0xff]
  %v22 = vld [vmem:[%s0 + $0x18] sm:$0xff]
  %v23 = vld [vmem:[%s0 + $0x20] sm:$0xff]
  %v24 = vld [vmem:[%s0 + $0x28] sm:$0xff]
  %v25 = vld [vmem:[%s0 + $0x30] sm:$0xff]
  %v26 = vld [vmem:[%s0 + $0x38] sm:$0xff]
  %v27 = vld [vmem:[%s0 + $0x40] sm:$0xff]
  %v28 = vld [vmem:[%s0 + $0x48] sm:$0xff]
  %v29 = vld [vmem:[%s0 + $0x50] sm:$0xff]
  %v30 = vld [vmem:[%s0 + $0x58] sm:$0xff]
  %v31 = vld [vmem:[%s0 + $0x60] sm:$0xff]
  %v32 = vld [vmem:[%s0 + $0x68] sm:$0xff]
  %v33 = vld [vmem:[%s0 + $0x70] sm:$0xff]
  %v34 = vld [vmem:[%s0 + $0x78] sm:$0xff]
  %v35 = vld [vmem:[%s0 + $0x80] sm:$0xff]
  %v36 = vld [vmem:[%s0 + $0x88] sm:$0xff]
  %v37 = vld [vmem:[%s0 + $0x90] sm:$0xff]
  %v38 = vld [vmem:[%s0 + $0x98] sm:$0xff]
  %v39 = vld [vmem:[%s0 + $0xa0] sm:$0xff]
  %v40 = vld [vmem:[%s0 + $0xa8] sm:$0xff]
  %v41 = vld [vmem:[%s0 + $0xb0] sm:$0xff]
  %v42 = vld [vmem:[%s0 + $0xb8] sm:$0xff]
  %v43 = vld [vmem:[%s0 + $0xc0] sm:$0xff]
  %v44 = vld [vmem:[%s0 + $0xc8] sm:$0xff]
  %v45 = vld [vmem:[%s0 + $0xd0] sm:$0xff]
  %v46 = vld [vmem:[%s0 + $0xd8] sm:$0xff]
  %v47 = vld [vmem:[%s0 + $0xe0] sm:$0xff]
  %v48 = vld [vmem:[%s0 + $0xe8] sm:$0xff]
  %v49 = vld [vmem:[%s0 + $0xf0] sm:$0xff]
  %v50 = vld [vmem:[%s0 + $0xf8] sm:$0xff]
  %v51 = vlaneseq
  %v52 = vshrl.u32 %v51, 7
  %v53 = vsub.s32 0, %v52
  %v54 = vrot.slane %v18, %v53
  %vm55 = vcmask 261120
  %v57 = vsel %vm55, %v19, 0
  %v60 = vsel %vm55, %v20, 0
  %v63 = vsel %vm55, %v21, 0
  %v66 = vsel %vm55, %v22, 0
  %v69 = vsel %vm55, %v23, 0
  %v72 = vsel %vm55, %v24, 0
  %v75 = vsel %vm55, %v25, 0
  %v78 = vsel %vm55, %v26, 0
  %v81 = vsel %vm55, %v27, 0
  %v84 = vsel %vm55, %v28, 0
  %v87 = vsel %vm55, %v29, 0
  %v90 = vsel %vm55, %v30, 0
  %v93 = vsel %vm55, %v31, 0
  %v96 = vsel %vm55, %v32, 0
  %v99 = vsel %vm55, %v33, 0
  %v102 = vsel %vm55, %v34, 0
  %v105 = vsel %vm55, %v35, 0
  %v108 = vsel %vm55, %v36, 0
  %v111 = vsel %vm55, %v37, 0
  %v114 = vsel %vm55, %v38, 0
  %v117 = vsel %vm55, %v39, 0
  %v120 = vsel %vm55, %v40, 0
  %v123 = vsel %vm55, %v41, 0
  %v126 = vsel %vm55, %v42, 0
  %v129 = vsel %vm55, %v43, 0
  %v132 = vsel %vm55, %v44, 0
  %v135 = vsel %vm55, %v45, 0
  %v138 = vsel %vm55, %v46, 0
  %v141 = vsel %vm55, %v47, 0
  %v144 = vsel %vm55, %v48, 0
  %v147 = vsel %vm55, %v49, 0
  %v150 = vsel %vm55, %v50, 0
  %152 = vmatprep.subr.mxu0 0.0
  %153 = vmatpush1.msra.mxu0 %v14
  %154 = vmatprep.subr.mxu0 0.0
  %155 = vmatpush1.msra.mxu0 %v15
  %156 = vmatprep.subr.mxu0 0.0
  %157 = vmatpush1.msra.mxu0 %v16
  %158 = vmatprep.subr.mxu0 0.0
  %159 = vmatpush1.msra.mxu0 %v17
  %160 = vmatprep.subr.mxu0 0.0
  %161 = vmatpush1.msra.mxu0 0.0
  %162 = vmatprep.subr.mxu0 0.0
  %163 = vmatpush1.msra.mxu0 0.0
  %164 = vmatprep.subr.mxu0 0.0
  %165 = vmatpush1.msra.mxu0 0.0
  %166 = vmatprep.subr.mxu0 0.0
  %167 = vmatpush1.msra.mxu0 0.0
  %168 = vmatprep.subr.mxu0 0.0
  %169 = vmatpush1.msra.mxu0 0.0
  %170 = vmatprep.subr.mxu0 0.0
  %171 = vmatpush1.msra.mxu0 0.0
  %172 = vmatprep.subr.mxu0 0.0
  %173 = vmatpush1.msra.mxu0 0.0
  %174 = vmatprep.subr.mxu0 0.0
  %175 = vmatpush1.msra.mxu0 0.0
  %176 = vmatprep.subr.mxu0 0.0
  %177 = vmatpush1.msra.mxu0 0.0
  %178 = vmatprep.subr.mxu0 0.0
  %179 = vmatpush1.msra.mxu0 0.0
  %180 = vmatprep.subr.mxu0 0.0
  %181 = vmatpush1.msra.mxu0 0.0
  %182 = vmatprep.subr.mxu0 0.0
  %183 = vmatpush1.msra.mxu0 0.0
  %184 = vmatprep.subr.mxu0 0.0
  %185 = vmatpush1.msra.mxu0 0.0
  %186 = vmatprep.subr.mxu0 0.0
  %187 = vmatpush1.msra.mxu0 0.0
  %188 = vmatprep.subr.mxu0 0.0
  %189 = vmatpush1.msra.mxu0 0.0
  %190 = vmatprep.subr.mxu0 0.0
  %191 = vmatpush1.msra.mxu0 0.0
  %192 = vmatprep.subr.mxu0 0.0
  %193 = vmatpush1.msra.mxu0 0.0
  %194 = vmatprep.subr.mxu0 0.0
  %195 = vmatpush1.msra.mxu0 0.0
  %196 = vmatprep.subr.mxu0 0.0
  %197 = vmatpush1.msra.mxu0 0.0
  %198 = vmatprep.subr.mxu0 0.0
  %199 = vmatpush1.msra.mxu0 0.0
  %200 = vmatprep.subr.mxu0 0.0
  %201 = vmatpush1.msra.mxu0 0.0
  %202 = vmatprep.subr.mxu0 0.0
  %203 = vmatpush1.msra.mxu0 0.0
  %204 = vmatprep.subr.mxu0 0.0
  %205 = vmatpush1.msra.mxu0 0.0
  %206 = vmatprep.subr.mxu0 0.0
  %207 = vmatpush1.msra.mxu0 0.0
  %208 = vmatprep.subr.mxu0 0.0
  %209 = vmatpush1.msra.mxu0 0.0
  %210 = vmatprep.subr.mxu0 0.0
  %211 = vmatpush1.msra.mxu0 0.0
  %212 = vmatprep.subr.mxu0 0.0
  %213 = vmatpush1.msra.mxu0 0.0
  %214 = vmatprep.subr.mxu0 0.0
  %215 = vmatpush1.msra.mxu0 0.0
  %216 = vmatprep.mubr.f32.mxu0 0.0
  %217 = vmatmul.mubr.f32.gmra.mrb[0].mxu0 %v57
  %v218 = vpop.f32.mrb[0].mxu0
  %v219 = vadd.f32 %v54, %v218
  %v220 = vpop.f32.mrb[0].mxu0
  %221 = vmatprep.mubr.f32.mxu0 0.0
  %222 = vmatmul.mubr.f32.gmra.mrb[0].mxu0 %v60
  %v223 = vpop.f32.mrb[0].mxu0
  %v224 = vadd.f32 %v54, %v223
  %v225 = vpop.f32.mrb[0].mxu0
  %226 = vmatprep.mubr.f32.mxu0 0.0
  %227 = vmatmul.mubr.f32.gmra.mrb[0].mxu0 %v63
  %v228 = vpop.f32.mrb[0].mxu0
  %v229 = vadd.f32 %v54, %v228
  %v230 = vpop.f32.mrb[0].mxu0
  %231 = vmatprep.mubr.f32.mxu0 0.0
  %232 = vmatmul.mubr.f32.gmra.mrb[0].mxu0 %v66
  %v233 = vpop.f32.mrb[0].mxu0
  %v234 = vadd.f32 %v54, %v233
  %v235 = vpop.f32.mrb[0].mxu0
  %236 = vmatprep.mubr.f32.mxu0 0.0
  %237 = vmatmul.mubr.f32.gmra.mrb[0].mxu0 %v69
  %v238 = vpop.f32.mrb[0].mxu0
  %v239 = vadd.f32 %v54, %v238
  %v240 = vpop.f32.mrb[0].mxu0
  %241 = vmatprep.mubr.f32.mxu0 0.0
  %242 = vmatmul.mubr.f32.gmra.mrb[0].mxu0 %v72
  %v243 = vpop.f32.mrb[0].mxu0
  %v244 = vadd.f32 %v54, %v243
  %v245 = vpop.f32.mrb[0].mxu0
  %246 = vmatprep.mubr.f32.mxu0 0.0
  %247 = vmatmul.mubr.f32.gmra.mrb[0].mxu0 %v75
  %v248 = vpop.f32.mrb[0].mxu0
  %v249 = vadd.f32 %v54, %v248
  %v250 = vpop.f32.mrb[0].mxu0
  %251 = vmatprep.mubr.f32.mxu0 0.0
  %252 = vmatmul.mubr.f32.gmra.mrb[0].mxu0 %v78
  %v253 = vpop.f32.mrb[0].mxu0
  %v254 = vadd.f32 %v54, %v253
  %v255 = vpop.f32.mrb[0].mxu0
  %256 = vmatprep.mubr.f32.mxu0 0.0
  %257 = vmatmul.mubr.f32.gmra.mrb[0].mxu0 %v81
  %v258 = vpop.f32.mrb[0].mxu0
  %v259 = vadd.f32 %v54, %v258
  %v260 = vpop.f32.mrb[0].mxu0
  %261 = vmatprep.mubr.f32.mxu0 0.0
  %262 = vmatmul.mubr.f32.gmra.mrb[0].mxu0 %v84
  %v263 = vpop.f32.mrb[0].mxu0
  %v264 = vadd.f32 %v54, %v263
  %v265 = vpop.f32.mrb[0].mxu0
  %266 = vmatprep.mubr.f32.mxu0 0.0
  %267 = vmatmul.mubr.f32.gmra.mrb[0].mxu0 %v87
  %v268 = vpop.f32.mrb[0].mxu0
  %v269 = vadd.f32 %v54, %v268
  %v270 = vpop.f32.mrb[0].mxu0
  %271 = vmatprep.mubr.f32.mxu0 0.0
  %272 = vmatmul.mubr.f32.gmra.mrb[0].mxu0 %v90
  %v273 = vpop.f32.mrb[0].mxu0
  %v274 = vadd.f32 %v54, %v273
  %v275 = vpop.f32.mrb[0].mxu0
  %276 = vmatprep.mubr.f32.mxu0 0.0
  %277 = vmatmul.mubr.f32.gmra.mrb[0].mxu0 %v93
  %v278 = vpop.f32.mrb[0].mxu0
  %v279 = vadd.f32 %v54, %v278
  %v280 = vpop.f32.mrb[0].mxu0
  %281 = vmatprep.mubr.f32.mxu0 0.0
  %282 = vmatmul.mubr.f32.gmra.mrb[0].mxu0 %v96
  %v283 = vpop.f32.mrb[0].mxu0
  %v284 = vadd.f32 %v54, %v283
  %v285 = vpop.f32.mrb[0].mxu0
  %286 = vmatprep.mubr.f32.mxu0 0.0
  %287 = vmatmul.mubr.f32.gmra.mrb[0].mxu0 %v99
  %v288 = vpop.f32.mrb[0].mxu0
  %v289 = vadd.f32 %v54, %v288
  %v290 = vpop.f32.mrb[0].mxu0
  %291 = vmatprep.mubr.f32.mxu0 0.0
  %292 = vmatmul.mubr.f32.gmra.mrb[0].mxu0 %v102
  %v293 = vpop.f32.mrb[0].mxu0
  %v294 = vadd.f32 %v54, %v293
  %v295 = vpop.f32.mrb[0].mxu0
  %296 = vmatprep.mubr.f32.mxu0 0.0
  %297 = vmatmul.mubr.f32.gmra.mrb[0].mxu0 %v105
  %v298 = vpop.f32.mrb[0].mxu0
  %v299 = vadd.f32 %v54, %v298
  %v300 = vpop.f32.mrb[0].mxu0
  %301 = vmatprep.mubr.f32.mxu0 0.0
  %302 = vmatmul.mubr.f32.gmra.mrb[0].mxu0 %v108
  %v303 = vpop.f32.mrb[0].mxu0
  %v304 = vadd.f32 %v54, %v303
  %v305 = vpop.f32.mrb[0].mxu0
  %306 = vmatprep.mubr.f32.mxu0 0.0
  %307 = vmatmul.mubr.f32.gmra.mrb[0].mxu0 %v111
  %v308 = vpop.f32.mrb[0].mxu0
  %v309 = vadd.f32 %v54, %v308
  %v310 = vpop.f32.mrb[0].mxu0
  %311 = vmatprep.mubr.f32.mxu0 0.0
  %312 = vmatmul.mubr.f32.gmra.mrb[0].mxu0 %v114
  %v313 = vpop.f32.mrb[0].mxu0
  %v314 = vadd.f32 %v54, %v313
  %v315 = vpop.f32.mrb[0].mxu0
  %316 = vmatprep.mubr.f32.mxu0 0.0
  %317 = vmatmul.mubr.f32.gmra.mrb[0].mxu0 %v117
  %v318 = vpop.f32.mrb[0].mxu0
  %v319 = vadd.f32 %v54, %v318
  %v320 = vpop.f32.mrb[0].mxu0
  %321 = vmatprep.mubr.f32.mxu0 0.0
  %322 = vmatmul.mubr.f32.gmra.mrb[0].mxu0 %v120
  %v323 = vpop.f32.mrb[0].mxu0
  %v324 = vadd.f32 %v54, %v323
  %v325 = vpop.f32.mrb[0].mxu0
  %326 = vmatprep.mubr.f32.mxu0 0.0
  %327 = vmatmul.mubr.f32.gmra.mrb[0].mxu0 %v123
  %v328 = vpop.f32.mrb[0].mxu0
  %v329 = vadd.f32 %v54, %v328
  %v330 = vpop.f32.mrb[0].mxu0
  %331 = vmatprep.mubr.f32.mxu0 0.0
  %332 = vmatmul.mubr.f32.gmra.mrb[0].mxu0 %v126
  %v333 = vpop.f32.mrb[0].mxu0
  %v334 = vadd.f32 %v54, %v333
  %v335 = vpop.f32.mrb[0].mxu0
  %336 = vmatprep.mubr.f32.mxu0 0.0
  %337 = vmatmul.mubr.f32.gmra.mrb[0].mxu0 %v129
  %v338 = vpop.f32.mrb[0].mxu0
  %v339 = vadd.f32 %v54, %v338
  %v340 = vpop.f32.mrb[0].mxu0
  %341 = vmatprep.mubr.f32.mxu0 0.0
  %342 = vmatmul.mubr.f32.gmra.mrb[0].mxu0 %v132
  %v343 = vpop.f32.mrb[0].mxu0
  %v344 = vadd.f32 %v54, %v343
  %v345 = vpop.f32.mrb[0].mxu0
  %346 = vmatprep.mubr.f32.mxu0 0.0
  %347 = vmatmul.mubr.f32.gmra.mrb[0].mxu0 %v135
  %v348 = vpop.f32.mrb[0].mxu0
  %v349 = vadd.f32 %v54, %v348
  %v350 = vpop.f32.mrb[0].mxu0
  %351 = vmatprep.mubr.f32.mxu0 0.0
  %352 = vmatmul.mubr.f32.gmra.mrb[0].mxu0 %v138
  %v353 = vpop.f32.mrb[0].mxu0
  %v354 = vadd.f32 %v54, %v353
  %v355 = vpop.f32.mrb[0].mxu0
  %356 = vmatprep.mubr.f32.mxu0 0.0
  %357 = vmatmul.mubr.f32.gmra.mrb[0].mxu0 %v141
  %v358 = vpop.f32.mrb[0].mxu0
  %v359 = vadd.f32 %v54, %v358
  %v360 = vpop.f32.mrb[0].mxu0
  %361 = vmatprep.mubr.f32.mxu0 0.0
  %362 = vmatmul.mubr.f32.gmra.mrb[0].mxu0 %v144
  %v363 = vpop.f32.mrb[0].mxu0
  %v364 = vadd.f32 %v54, %v363
  %v365 = vpop.f32.mrb[0].mxu0
  %366 = vmatprep.mubr.f32.mxu0 0.0
  %367 = vmatmul.mubr.f32.gmra.mrb[0].mxu0 %v147
  %v368 = vpop.f32.mrb[0].mxu0
  %v369 = vadd.f32 %v54, %v368
  %v370 = vpop.f32.mrb[0].mxu0
  %371 = vmatprep.mubr.f32.mxu0 0.0
  %372 = vmatmul.mubr.f32.gmra.mrb[0].mxu0 %v150
  %v373 = vpop.f32.mrb[0].mxu0
  %v374 = vadd.f32 %v54, %v373
  %v375 = vpop.f32.mrb[0].mxu0
  %376 = vdwg.mxu0
  %v377 = vmax.f32 %v219, 0.0
  %v378 = vmax.f32 %v224, 0.0
  %v379 = vmax.f32 %v229, 0.0
  %v380 = vmax.f32 %v234, 0.0
  %v381 = vmax.f32 %v239, 0.0
  %v382 = vmax.f32 %v244, 0.0
  %v383 = vmax.f32 %v249, 0.0
  %v384 = vmax.f32 %v254, 0.0
  %v385 = vmax.f32 %v259, 0.0
  %v386 = vmax.f32 %v264, 0.0
  %v387 = vmax.f32 %v269, 0.0
  %v388 = vmax.f32 %v274, 0.0
  %v389 = vmax.f32 %v279, 0.0
  %v390 = vmax.f32 %v284, 0.0
  %v391 = vmax.f32 %v289, 0.0
  %v392 = vmax.f32 %v294, 0.0
  %v393 = vmax.f32 %v299, 0.0
  %v394 = vmax.f32 %v304, 0.0
  %v395 = vmax.f32 %v309, 0.0
  %v396 = vmax.f32 %v314, 0.0
  %v397 = vmax.f32 %v319, 0.0
  %v398 = vmax.f32 %v324, 0.0
  %v399 = vmax.f32 %v329, 0.0
  %v400 = vmax.f32 %v334, 0.0
  %v401 = vmax.f32 %v339, 0.0
  %v402 = vmax.f32 %v344, 0.0
  %v403 = vmax.f32 %v349, 0.0
  %v404 = vmax.f32 %v354, 0.0
  %v405 = vmax.f32 %v359, 0.0
  %v406 = vmax.f32 %v364, 0.0
  %v407 = vmax.f32 %v369, 0.0
  %v408 = vmax.f32 %v374, 0.0
  %v409 = vlaneseq
  %v410 = vand.u32 %v409, 127
  %v411 = vadd.s32 %v410, 128
  %v412 = vlaneseq
  %v413 = vshrl.u32 %v412, 7
  %v414 = vmul.u32 %v413, 64
  %vm415 = vcmp.ge.s32.totalorder %v410, %v414
  %vm416 = vcmp.ge.s32.totalorder %v411, %v414
  %v417 = vadd.s32 %v414, 64
  %vm418 = vcmp.lt.s32.totalorder %v410, %v417
  %vm419 = vcmp.lt.s32.totalorder %v411, %v417
  %vm420 = vmand %vm415, %vm418
  %vm421 = vmand %vm416, %vm419
  %v422 = vsel %vm420, 0.015625, 0.0
  %v423 = vsel %vm421, 0.015625, 0.0
  %424 = vmatprep.subr.mxu0 0.0
  %425 = vmatpush1.msra.mxu0 %v377
  %426 = vmatprep.subr.mxu0 0.0
  %427 = vmatpush1.msra.mxu0 %v378
  %428 = vmatprep.subr.mxu0 0.0
  %429 = vmatpush1.msra.mxu0 %v379
  %430 = vmatprep.subr.mxu0 0.0
  %431 = vmatpush1.msra.mxu0 %v380
  %432 = vmatprep.subr.mxu0 0.0
  %433 = vmatpush1.msra.mxu0 %v381
  %434 = vmatprep.subr.mxu0 0.0
  %435 = vmatpush1.msra.mxu0 %v382
  %436 = vmatprep.subr.mxu0 0.0
  %437 = vmatpush1.msra.mxu0 %v383
  %438 = vmatprep.subr.mxu0 0.0
  %439 = vmatpush1.msra.mxu0 %v384
  %440 = vmatprep.subr.mxu0 0.0
  %441 = vmatpush1.msra.mxu0 %v385
  %442 = vmatprep.subr.mxu0 0.0
  %443 = vmatpush1.msra.mxu0 %v386
  %444 = vmatprep.subr.mxu0 0.0
  %445 = vmatpush1.msra.mxu0 %v387
  %446 = vmatprep.subr.mxu0 0.0
  %447 = vmatpush1.msra.mxu0 %v388
  %448 = vmatprep.subr.mxu0 0.0
  %449 = vmatpush1.msra.mxu0 %v389
  %450 = vmatprep.subr.mxu0 0.0
  %451 = vmatpush1.msra.mxu0 %v390
  %452 = vmatprep.subr.mxu0 0.0
  %453 = vmatpush1.msra.mxu0 %v391
  %454 = vmatprep.subr.mxu0 0.0
  %455 = vmatpush1.msra.mxu0 %v392
  %456 = vmatprep.subr.mxu0 0.0
  %457 = vmatpush1.msra.mxu0 %v393
  %458 = vmatprep.subr.mxu0 0.0
  %459 = vmatpush1.msra.mxu0 %v394
  %460 = vmatprep.subr.mxu0 0.0
  %461 = vmatpush1.msra.mxu0 %v395
  %462 = vmatprep.subr.mxu0 0.0
  %463 = vmatpush1.msra.mxu0 %v396
  %464 = vmatprep.subr.mxu0 0.0
  %465 = vmatpush1.msra.mxu0 %v397
  %466 = vmatprep.subr.mxu0 0.0
  %467 = vmatpush1.msra.mxu0 %v398
  %468 = vmatprep.subr.mxu0 0.0
  %469 = vmatpush1.msra.mxu0 %v399
  %470 = vmatprep.subr.mxu0 0.0
  %471 = vmatpush1.msra.mxu0 %v400
  %472 = vmatprep.subr.mxu0 0.0
  %473 = vmatpush1.msra.mxu0 %v401
  %474 = vmatprep.subr.mxu0 0.0
  %475 = vmatpush1.msra.mxu0 %v402
  %476 = vmatprep.subr.mxu0 0.0
  %477 = vmatpush1.msra.mxu0 %v403
  %478 = vmatprep.subr.mxu0 0.0
  %479 = vmatpush1.msra.mxu0 %v404
  %480 = vmatprep.subr.mxu0 0.0
  %481 = vmatpush1.msra.mxu0 %v405
  %482 = vmatprep.subr.mxu0 0.0
  %483 = vmatpush1.msra.mxu0 %v406
  %484 = vmatprep.subr.mxu0 0.0
  %485 = vmatpush1.msra.mxu0 %v407
  %486 = vmatprep.subr.mxu0 0.0
  %487 = vmatpush1.msra.mxu0 %v408
  %488 = vmatprep.mubr.f32.mxu0 %v423
  %489 = vmatmul.mubr.f32.gmra.mrb[0].mxu0 %v422
  %v490 = vpop.f32.mrb[0].mxu0
  %v491 = vadd.f32 0.0, %v490
  %v492 = vpop.f32.mrb[0].mxu0
  %493 = vdwg.mxu0
  %v494 = vld [vmem:[%s2 + $0x28] sm:$0xff]
  %v495 = vld [vmem:[%s2 + $0x30] sm:$0xff]
  %v496 = vld [vmem:[%s2 + $0x38] sm:$0xff]
  %v497 = vld [vmem:[%s2 + $0x40] sm:$0xff]
  %v498 = vld [vmem:[%s2 + $0x48] sm:$0x1]
  %v499 = vlaneseq
  %v500 = vshrl.u32 %v499, 7
  %v501 = vsub.s32 0, %v500
  %v502 = vrot.slane %v498, %v501
  %v504 = vsel %vm55, %v491, 0
  %506 = vmatprep.subr.mxu0 0.0
  %507 = vmatpush1.msra.mxu0 %v494
  %508 = vmatprep.subr.mxu0 0.0
  %509 = vmatpush1.msra.mxu0 %v495
  %510 = vmatprep.subr.mxu0 0.0
  %511 = vmatpush1.msra.mxu0 %v496
  %512 = vmatprep.subr.mxu0 0.0
  %513 = vmatpush1.msra.mxu0 %v497
  %514 = vmatprep.subr.mxu0 0.0
  %515 = vmatpush1.msra.mxu0 0.0
  %516 = vmatprep.subr.mxu0 0.0
  %517 = vmatpush1.msra.mxu0 0.0
  %518 = vmatprep.subr.mxu0 0.0
  %519 = vmatpush1.msra.mxu0 0.0
  %520 = vmatprep.subr.mxu0 0.0
  %521 = vmatpush1.msra.mxu0 0.0
  %522 = vmatprep.subr.mxu0 0.0
  %523 = vmatpush1.msra.mxu0 0.0
  %524 = vmatprep.subr.mxu0 0.0
  %525 = vmatpush1.msra.mxu0 0.0
  %526 = vmatprep.subr.mxu0 0.0
  %527 = vmatpush1.msra.mxu0 0.0
  %528 = vmatprep.subr.mxu0 0.0
  %529 = vmatpush1.msra.mxu0 0.0
  %530 = vmatprep.subr.mxu0 0.0
  %531 = vmatpush1.msra.mxu0 0.0
  %532 = vmatprep.subr.mxu0 0.0
  %533 = vmatpush1.msra.mxu0 0.0
  %534 = vmatprep.subr.mxu0 0.0
  %535 = vmatpush1.msra.mxu0 0.0
  %536 = vmatprep.subr.mxu0 0.0
  %537 = vmatpush1.msra.mxu0 0.0
  %538 = vmatprep.subr.mxu0 0.0
  %539 = vmatpush1.msra.mxu0 0.0
  %540 = vmatprep.subr.mxu0 0.0
  %541 = vmatpush1.msra.mxu0 0.0
  %542 = vmatprep.subr.mxu0 0.0
  %543 = vmatpush1.msra.mxu0 0.0
  %544 = vmatprep.subr.mxu0 0.0
  %545 = vmatpush1.msra.mxu0 0.0
  %546 = vmatprep.subr.mxu0 0.0
  %547 = vmatpush1.msra.mxu0 0.0
  %548 = vmatprep.subr.mxu0 0.0
  %549 = vmatpush1.msra.mxu0 0.0
  %550 = vmatprep.subr.mxu0 0.0
  %551 = vmatpush1.msra.mxu0 0.0
  %552 = vmatprep.subr.mxu0 0.0
  %553 = vmatpush1.msra.mxu0 0.0
  %554 = vmatprep.subr.mxu0 0.0
  %555 = vmatpush1.msra.mxu0 0.0
  %556 = vmatprep.subr.mxu0 0.0
  %557 = vmatpush1.msra.mxu0 0.0
  %558 = vmatprep.subr.mxu0 0.0
  %559 = vmatpush1.msra.mxu0 0.0
  %560 = vmatprep.subr.mxu0 0.0
  %561 = vmatpush1.msra.mxu0 0.0
  %562 = vmatprep.subr.mxu0 0.0
  %563 = vmatpush1.msra.mxu0 0.0
  %564 = vmatprep.subr.mxu0 0.0
  %565 = vmatpush1.msra.mxu0 0.0
  %566 = vmatprep.subr.mxu0 0.0
  %567 = vmatpush1.msra.mxu0 0.0
  %568 = vmatprep.subr.mxu0 0.0
  %569 = vmatpush1.msra.mxu0 0.0
  %570 = vmatprep.mubr.f32.mxu0 0.0
  %571 = vmatmul.mubr.f32.gmra.mrb[0].mxu0 %v504
  %v572 = vpop.f32.mrb[0].mxu0
  %v573 = vadd.f32 %v502, %v572
  %v574 = vpop.f32.mrb[0].mxu0
  %575 = vdwg.mxu0
  %v576 = vld [vmem:[%s1] sm:$0xff]
  %v577 = vld [vmem:[%s1 + $0x8] sm:$0xff]
  %578 = vset.pattern.permute.xlu0 0
  %579 = vperm.xlu0 %578, %v576
  %v580 = vpop.permute.xlu0 %579
  %581 = vset.pattern.permute.xlu0 0
  %582 = vperm.xlu0 %581, %v577
  %v583 = vpop.permute.xlu0 %582
  %vm584 = vcmp.eq.s32.totalorder %v580, %v410
  %vm585 = vcmp.eq.s32.totalorder %v583, %v410
  %v586 = vsel %vm584, 1, 0
  %v587 = vsel %vm585, 1, 0
  %v588 = vcvt.s32.f32 %v586
  %v589 = vcvt.s32.f32 %v587
  %v590 = vld [vmem:[%s2 + $0x50] sm:$0xff]
  %v591 = vld [vmem:[%s2 + $0x58] sm:$0xff]
  %v592 = vld [vmem:[%s2 + $0x60] sm:$0xff]
  %v593 = vld [vmem:[%s2 + $0x68] sm:$0xff]
  %v594 = vld [vmem:[%s2 + $0x70] sm:$0x1]
  %v595 = vlaneseq
  %v596 = vshrl.u32 %v595, 7
  %v597 = vsub.s32 0, %v596
  %v598 = vrot.slane %v594, %v597
  %v600 = vsel %vm55, %v588, 0
  %v603 = vsel %vm55, %v589, 0
  %605 = vmatprep.subr.mxu0 0.0
  %606 = vmatpush1.msra.mxu0 %v590
  %607 = vmatprep.subr.mxu0 0.0
  %608 = vmatpush1.msra.mxu0 %v591
  %609 = vmatprep.subr.mxu0 0.0
  %610 = vmatpush1.msra.mxu0 %v592
  %611 = vmatprep.subr.mxu0 0.0
  %612 = vmatpush1.msra.mxu0 %v593
  %613 = vmatprep.subr.mxu0 0.0
  %614 = vmatpush1.msra.mxu0 0.0
  %615 = vmatprep.subr.mxu0 0.0
  %616 = vmatpush1.msra.mxu0 0.0
  %617 = vmatprep.subr.mxu0 0.0
  %618 = vmatpush1.msra.mxu0 0.0
  %619 = vmatprep.subr.mxu0 0.0
  %620 = vmatpush1.msra.mxu0 0.0
  %621 = vmatprep.subr.mxu0 0.0
  %622 = vmatpush1.msra.mxu0 0.0
  %623 = vmatprep.subr.mxu0 0.0
  %624 = vmatpush1.msra.mxu0 0.0
  %625 = vmatprep.subr.mxu0 0.0
  %626 = vmatpush1.msra.mxu0 0.0
  %627 = vmatprep.subr.mxu0 0.0
  %628 = vmatpush1.msra.mxu0 0.0
  %629 = vmatprep.subr.mxu0 0.0
  %630 = vmatpush1.msra.mxu0 0.0
  %631 = vmatprep.subr.mxu0 0.0
  %632 = vmatpush1.msra.mxu0 0.0
  %633 = vmatprep.subr.mxu0 0.0
  %634 = vmatpush1.msra.mxu0 0.0
  %635 = vmatprep.subr.mxu0 0.0
  %636 = vmatpush1.msra.mxu0 0.0
  %637 = vmatprep.subr.mxu0 0.0
  %638 = vmatpush1.msra.mxu0 0.0
  %639 = vmatprep.subr.mxu0 0.0
  %640 = vmatpush1.msra.mxu0 0.0
  %641 = vmatprep.subr.mxu0 0.0
  %642 = vmatpush1.msra.mxu0 0.0
  %643 = vmatprep.subr.mxu0 0.0
  %644 = vmatpush1.msra.mxu0 0.0
  %645 = vmatprep.subr.mxu0 0.0
  %646 = vmatpush1.msra.mxu0 0.0
  %647 = vmatprep.subr.mxu0 0.0
  %648 = vmatpush1.msra.mxu0 0.0
  %649 = vmatprep.subr.mxu0 0.0
  %650 = vmatpush1.msra.mxu0 0.0
  %651 = vmatprep.subr.mxu0 0.0
  %652 = vmatpush1.msra.mxu0 0.0
  %653 = vmatprep.subr.mxu0 0.0
  %654 = vmatpush1.msra.mxu0 0.0
  %655 = vmatprep.subr.mxu0 0.0
  %656 = vmatpush1.msra.mxu0 0.0
  %657 = vmatprep.subr.mxu0 0.0
  %658 = vmatpush1.msra.mxu0 0.0
  %659 = vmatprep.subr.mxu0 0.0
  %660 = vmatpush1.msra.mxu0 0.0
  %661 = vmatprep.subr.mxu0 0.0
  %662 = vmatpush1.msra.mxu0 0.0
  %663 = vmatprep.subr.mxu0 0.0
  %664 = vmatpush1.msra.mxu0 0.0
  %665 = vmatprep.subr.mxu0 0.0
  %666 = vmatpush1.msra.mxu0 0.0
  %667 = vmatprep.subr.mxu0 0.0
  %668 = vmatpush1.msra.mxu0 0.0
  %669 = vmatprep.mubr.f32.mxu0 0.0
  %670 = vmatmul.mubr.f32.gmra.mrb[0].mxu0 %v600
  %v671 = vpop.f32.mrb[0].mxu0
  %v672 = vadd.f32 %v598, %v671
  %v673 = vpop.f32.mrb[0].mxu0
  %674 = vmatprep.mubr.f32.mxu0 0.0
  %675 = vmatmul.mubr.f32.gmra.mrb[0].mxu0 %v603
  %v676 = vpop.f32.mrb[0].mxu0
  %v677 = vadd.f32 %v598, %v676
  %v678 = vpop.f32.mrb[0].mxu0
  %679 = vdwg.mxu0
  %v680 = vld [vmem:[%s2 + $0x78] sm:$0xff]
  %v681 = vld [vmem:[%s2 + $0x80] sm:$0xff]
  %v682 = vld [vmem:[%s2 + $0x88] sm:$0xff]
  %v683 = vld [vmem:[%s2 + $0x90] sm:$0xff]
  %v684 = vld [vmem:[%s2 + $0x98] sm:$0x1]
  %v685 = vlaneseq
  %v686 = vshrl.u32 %v685, 7
  %v687 = vsub.s32 0, %v686
  %v688 = vrot.slane %v684, %v687
  %v690 = vsel %vm55, 0.0, 0
  %692 = vmatprep.subr.mxu0 0.0
  %693 = vmatpush1.msra.mxu0 %v680
  %694 = vmatprep.subr.mxu0 0.0
  %695 = vmatpush1.msra.mxu0 %v681
  %696 = vmatprep.subr.mxu0 0.0
  %697 = vmatpush1.msra.mxu0 %v682
  %698 = vmatprep.subr.mxu0 0.0
  %699 = vmatpush1.msra.mxu0 %v683
  %700 = vmatprep.subr.mxu0 0.0
  %701 = vmatpush1.msra.mxu0 0.0
  %702 = vmatprep.subr.mxu0 0.0
  %703 = vmatpush1.msra.mxu0 0.0
  %704 = vmatprep.subr.mxu0 0.0
  %705 = vmatpush1.msra.mxu0 0.0
  %706 = vmatprep.subr.mxu0 0.0
  %707 = vmatpush1.msra.mxu0 0.0
  %708 = vmatprep.subr.mxu0 0.0
  %709 = vmatpush1.msra.mxu0 0.0
  %710 = vmatprep.subr.mxu0 0.0
  %711 = vmatpush1.msra.mxu0 0.0
  %712 = vmatprep.subr.mxu0 0.0
  %713 = vmatpush1.msra.mxu0 0.0
  %714 = vmatprep.subr.mxu0 0.0
  %715 = vmatpush1.msra.mxu0 0.0
  %716 = vmatprep.subr.mxu0 0.0
  %717 = vmatpush1.msra.mxu0 0.0
  %718 = vmatprep.subr.mxu0 0.0
  %719 = vmatpush1.msra.mxu0 0.0
  %720 = vmatprep.subr.mxu0 0.0
  %721 = vmatpush1.msra.mxu0 0.0
  %722 = vmatprep.subr.mxu0 0.0
  %723 = vmatpush1.msra.mxu0 0.0
  %724 = vmatprep.subr.mxu0 0.0
  %725 = vmatpush1.msra.mxu0 0.0
  %726 = vmatprep.subr.mxu0 0.0
  %727 = vmatpush1.msra.mxu0 0.0
  %728 = vmatprep.subr.mxu0 0.0
  %729 = vmatpush1.msra.mxu0 0.0
  %730 = vmatprep.subr.mxu0 0.0
  %731 = vmatpush1.msra.mxu0 0.0
  %732 = vmatprep.subr.mxu0 0.0
  %733 = vmatpush1.msra.mxu0 0.0
  %734 = vmatprep.subr.mxu0 0.0
  %735 = vmatpush1.msra.mxu0 0.0
  %736 = vmatprep.subr.mxu0 0.0
  %737 = vmatpush1.msra.mxu0 0.0
  %738 = vmatprep.subr.mxu0 0.0
  %739 = vmatpush1.msra.mxu0 0.0
  %740 = vmatprep.subr.mxu0 0.0
  %741 = vmatpush1.msra.mxu0 0.0
  %742 = vmatprep.subr.mxu0 0.0
  %743 = vmatpush1.msra.mxu0 0.0
  %744 = vmatprep.subr.mxu0 0.0
  %745 = vmatpush1.msra.mxu0 0.0
  %746 = vmatprep.subr.mxu0 0.0
  %747 = vmatpush1.msra.mxu0 0.0
  %748 = vmatprep.subr.mxu0 0.0
  %749 = vmatpush1.msra.mxu0 0.0
  %750 = vmatprep.subr.mxu0 0.0
  %751 = vmatpush1.msra.mxu0 0.0
  %752 = vmatprep.subr.mxu0 0.0
  %753 = vmatpush1.msra.mxu0 0.0
  %754 = vmatprep.subr.mxu0 0.0
  %755 = vmatpush1.msra.mxu0 0.0
  %756 = vmatprep.mubr.f32.mxu0 0.0
  %757 = vmatmul.mubr.f32.gmra.mrb[0].mxu0 %v690
  %v758 = vpop.f32.mrb[0].mxu0
  %v759 = vadd.f32 %v688, %v758
  %v760 = vpop.f32.mrb[0].mxu0
  %761 = vdwg.mxu0
  %v762 = vadd.f32 %v672, %v759
  %v763 = vxor.u32 %v762, 2147483648
  %v764 = vmul.f32 %v763, 1.442695
  %v765 = vpow.pop %v764
  %v766 = vadd.f32 %v765, 1.0
  %v767 = vrcp.pop %v766
  %v768 = vmul.f32 1.0, %v767
  %770 = vrot.lane.b32.xlu0 %v759, 64
  %v771 = vpop.permute.xlu0 %770
  %v773 = vmul.f32 %v768, %v771
  %775 = vrot.lane.b32.xlu0 %v773, 64
  %v776 = vpop.permute.xlu0 %775
  %v778 = vadd.f32 %v672, %v776
  %v779 = vtanh.pop %v778
  %v780 = vsub.f32 1.0, %v768
  %782 = vrot.lane.b32.xlu0 %v779, 96
  %v783 = vpop.permute.xlu0 %782
  %v785 = vmul.f32 %v780, %v783
  %v786 = vmul.f32 %v768, 0.0
  %v787 = vadd.f32 %v785, %v786
  %789 = vrot.lane.b32.xlu0 %v787, 96
  %v790 = vpop.permute.xlu0 %789
  %v791 = vsel %vm55, %v790, 0
  %793 = vmatprep.subr.mxu0 0.0
  %794 = vmatpush1.msra.mxu0 %v680
  %795 = vmatprep.subr.mxu0 0.0
  %796 = vmatpush1.msra.mxu0 %v681
  %797 = vmatprep.subr.mxu0 0.0
  %798 = vmatpush1.msra.mxu0 %v682
  %799 = vmatprep.subr.mxu0 0.0
  %800 = vmatpush1.msra.mxu0 %v683
  %801 = vmatprep.subr.mxu0 0.0
  %802 = vmatpush1.msra.mxu0 0.0
  %803 = vmatprep.subr.mxu0 0.0
  %804 = vmatpush1.msra.mxu0 0.0
  %805 = vmatprep.subr.mxu0 0.0
  %806 = vmatpush1.msra.mxu0 0.0
  %807 = vmatprep.subr.mxu0 0.0
  %808 = vmatpush1.msra.mxu0 0.0
  %809 = vmatprep.subr.mxu0 0.0
  %810 = vmatpush1.msra.mxu0 0.0
  %811 = vmatprep.subr.mxu0 0.0
  %812 = vmatpush1.msra.mxu0 0.0
  %813 = vmatprep.subr.mxu0 0.0
  %814 = vmatpush1.msra.mxu0 0.0
  %815 = vmatprep.subr.mxu0 0.0
  %816 = vmatpush1.msra.mxu0 0.0
  %817 = vmatprep.subr.mxu0 0.0
  %818 = vmatpush1.msra.mxu0 0.0
  %819 = vmatprep.subr.mxu0 0.0
  %820 = vmatpush1.msra.mxu0 0.0
  %821 = vmatprep.subr.mxu0 0.0
  %822 = vmatpush1.msra.mxu0 0.0
  %823 = vmatprep.subr.mxu0 0.0
  %824 = vmatpush1.msra.mxu0 0.0
  %825 = vmatprep.subr.mxu0 0.0
  %826 = vmatpush1.msra.mxu0 0.0
  %827 = vmatprep.subr.mxu0 0.0
  %828 = vmatpush1.msra.mxu0 0.0
  %829 = vmatprep.subr.mxu0 0.0
  %830 = vmatpush1.msra.mxu0 0.0
  %831 = vmatprep.subr.mxu0 0.0
  %832 = vmatpush1.msra.mxu0 0.0
  %833 = vmatprep.subr.mxu0 0.0
  %834 = vmatpush1.msra.mxu0 0.0
  %835 = vmatprep.subr.mxu0 0.0
  %836 = vmatpush1.msra.mxu0 0.0
  %837 = vmatprep.subr.mxu0 0.0
  %838 = vmatpush1.msra.mxu0 0.0
  %839 = vmatprep.subr.mxu0 0.0
  %840 = vmatpush1.msra.mxu0 0.0
  %841 = vmatprep.subr.mxu0 0.0
  %842 = vmatpush1.msra.mxu0 0.0
  %843 = vmatprep.subr.mxu0 0.0
  %844 = vmatpush1.msra.mxu0 0.0
  %845 = vmatprep.subr.mxu0 0.0
  %846 = vmatpush1.msra.mxu0 0.0
  %847 = vmatprep.subr.mxu0 0.0
  %848 = vmatpush1.msra.mxu0 0.0
  %849 = vmatprep.subr.mxu0 0.0
  %850 = vmatpush1.msra.mxu0 0.0
  %851 = vmatprep.subr.mxu0 0.0
  %852 = vmatpush1.msra.mxu0 0.0
  %853 = vmatprep.subr.mxu0 0.0
  %854 = vmatpush1.msra.mxu0 0.0
  %855 = vmatprep.subr.mxu0 0.0
  %856 = vmatpush1.msra.mxu0 0.0
  %857 = vmatprep.mubr.f32.mxu0 0.0
  %858 = vmatmul.mubr.f32.gmra.mrb[0].mxu0 %v791
  %v859 = vpop.f32.mrb[0].mxu0
  %v860 = vadd.f32 %v688, %v859
  %v861 = vpop.f32.mrb[0].mxu0
  %862 = vdwg.mxu0
  %v864 = vrot.slane %v860, 4
  %v866 = vadd.f32 %v672, %v864
  %v867 = vxor.u32 %v866, 2147483648
  %v868 = vmul.f32 %v867, 1.442695
  %v869 = vpow.pop %v868
  %v870 = vadd.f32 %v869, 1.0
  %v871 = vrcp.pop %v870
  %v872 = vmul.f32 1.0, %v871
  %873 = vrot.lane.b32.xlu0 %v864, 64
  %v874 = vpop.permute.xlu0 %873
  %v876 = vmul.f32 %v872, %v874
  %878 = vrot.lane.b32.xlu0 %v876, 64
  %v879 = vpop.permute.xlu0 %878
  %v881 = vadd.f32 %v672, %v879
  %v882 = vtanh.pop %v881
  %v883 = vsub.f32 1.0, %v872
  %885 = vrot.lane.b32.xlu0 %v882, 96
  %v886 = vpop.permute.xlu0 %885
  %v888 = vmul.f32 %v883, %v886
  %v889 = vrot.slane %v787, 4
  %v891 = vmul.f32 %v872, %v889
  %v892 = vadd.f32 %v888, %v891
  %v894 = vrot.slane %v892, 4
  %895 = vrot.lane.b32.xlu0 %v894, 96
  %v896 = vpop.permute.xlu0 %895
  %v897 = vsel %vm55, %v896, 0
  %899 = vmatprep.subr.mxu0 0.0
  %900 = vmatpush1.msra.mxu0 %v680
  %901 = vmatprep.subr.mxu0 0.0
  %902 = vmatpush1.msra.mxu0 %v681
  %903 = vmatprep.subr.mxu0 0.0
  %904 = vmatpush1.msra.mxu0 %v682
  %905 = vmatprep.subr.mxu0 0.0
  %906 = vmatpush1.msra.mxu0 %v683
  %907 = vmatprep.subr.mxu0 0.0
  %908 = vmatpush1.msra.mxu0 0.0
  %909 = vmatprep.subr.mxu0 0.0
  %910 = vmatpush1.msra.mxu0 0.0
  %911 = vmatprep.subr.mxu0 0.0
  %912 = vmatpush1.msra.mxu0 0.0
  %913 = vmatprep.subr.mxu0 0.0
  %914 = vmatpush1.msra.mxu0 0.0
  %915 = vmatprep.subr.mxu0 0.0
  %916 = vmatpush1.msra.mxu0 0.0
  %917 = vmatprep.subr.mxu0 0.0
  %918 = vmatpush1.msra.mxu0 0.0
  %919 = vmatprep.subr.mxu0 0.0
  %920 = vmatpush1.msra.mxu0 0.0
  %921 = vmatprep.subr.mxu0 0.0
  %922 = vmatpush1.msra.mxu0 0.0
  %923 = vmatprep.subr.mxu0 0.0
  %924 = vmatpush1.msra.mxu0 0.0
  %925 = vmatprep.subr.mxu0 0.0
  %926 = vmatpush1.msra.mxu0 0.0
  %927 = vmatprep.subr.mxu0 0.0
  %928 = vmatpush1.msra.mxu0 0.0
  %929 = vmatprep.subr.mxu0 0.0
  %930 = vmatpush1.msra.mxu0 0.0
  %931 = vmatprep.subr.mxu0 0.0
  %932 = vmatpush1.msra.mxu0 0.0
  %933 = vmatprep.subr.mxu0 0.0
  %934 = vmatpush1.msra.mxu0 0.0
  %935 = vmatprep.subr.mxu0 0.0
  %936 = vmatpush1.msra.mxu0 0.0
  %937 = vmatprep.subr.mxu0 0.0
  %938 = vmatpush1.msra.mxu0 0.0
  %939 = vmatprep.subr.mxu0 0.0
  %940 = vmatpush1.msra.mxu0 0.0
  %941 = vmatprep.subr.mxu0 0.0
  %942 = vmatpush1.msra.mxu0 0.0
  %943 = vmatprep.subr.mxu0 0.0
  %944 = vmatpush1.msra.mxu0 0.0
  %945 = vmatprep.subr.mxu0 0.0
  %946 = vmatpush1.msra.mxu0 0.0
  %947 = vmatprep.subr.mxu0 0.0
  %948 = vmatpush1.msra.mxu0 0.0
  %949 = vmatprep.subr.mxu0 0.0
  %950 = vmatpush1.msra.mxu0 0.0
  %951 = vmatprep.subr.mxu0 0.0
  %952 = vmatpush1.msra.mxu0 0.0
  %953 = vmatprep.subr.mxu0 0.0
  %954 = vmatpush1.msra.mxu0 0.0
  %955 = vmatprep.subr.mxu0 0.0
  %956 = vmatpush1.msra.mxu0 0.0
  %957 = vmatprep.subr.mxu0 0.0
  %958 = vmatpush1.msra.mxu0 0.0
  %959 = vmatprep.subr.mxu0 0.0
  %960 = vmatpush1.msra.mxu0 0.0
  %961 = vmatprep.subr.mxu0 0.0
  %962 = vmatpush1.msra.mxu0 0.0
  %963 = vmatprep.mubr.f32.mxu0 0.0
  %964 = vmatmul.mubr.f32.gmra.mrb[0].mxu0 %v897
  %v965 = vpop.f32.mrb[0].mxu0
  %v966 = vadd.f32 %v688, %v965
  %v967 = vpop.f32.mrb[0].mxu0
  %968 = vdwg.mxu0
  %v969 = vadd.f32 %v677, %v966
  %v970 = vxor.u32 %v969, 2147483648
  %v971 = vmul.f32 %v970, 1.442695
  %v972 = vpow.pop %v971
  %v973 = vadd.f32 %v972, 1.0
  %v974 = vrcp.pop %v973
  %v975 = vmul.f32 1.0, %v974
  %977 = vrot.lane.b32.xlu0 %v966, 64
  %v978 = vpop.permute.xlu0 %977
  %v980 = vmul.f32 %v975, %v978
  %982 = vrot.lane.b32.xlu0 %v980, 64
  %v983 = vpop.permute.xlu0 %982
  %v985 = vadd.f32 %v677, %v983
  %v986 = vtanh.pop %v985
  %v987 = vsub.f32 1.0, %v975
  %989 = vrot.lane.b32.xlu0 %v986, 96
  %v990 = vpop.permute.xlu0 %989
  %v992 = vmul.f32 %v987, %v990
  %v994 = vmul.f32 %v975, %v894
  %v995 = vadd.f32 %v992, %v994
  %997 = vrot.lane.b32.xlu0 %v995, 96
  %v998 = vpop.permute.xlu0 %997
  %v999 = vsel %vm55, %v998, 0
  %1001 = vmatprep.subr.mxu0 0.0
  %1002 = vmatpush1.msra.mxu0 %v680
  %1003 = vmatprep.subr.mxu0 0.0
  %1004 = vmatpush1.msra.mxu0 %v681
  %1005 = vmatprep.subr.mxu0 0.0
  %1006 = vmatpush1.msra.mxu0 %v682
  %1007 = vmatprep.subr.mxu0 0.0
  %1008 = vmatpush1.msra.mxu0 %v683
  %1009 = vmatprep.subr.mxu0 0.0
  %1010 = vmatpush1.msra.mxu0 0.0
  %1011 = vmatprep.subr.mxu0 0.0
  %1012 = vmatpush1.msra.mxu0 0.0
  %1013 = vmatprep.subr.mxu0 0.0
  %1014 = vmatpush1.msra.mxu0 0.0
  %1015 = vmatprep.subr.mxu0 0.0
  %1016 = vmatpush1.msra.mxu0 0.0
  %1017 = vmatprep.subr.mxu0 0.0
  %1018 = vmatpush1.msra.mxu0 0.0
  %1019 = vmatprep.subr.mxu0 0.0
  %1020 = vmatpush1.msra.mxu0 0.0
  %1021 = vmatprep.subr.mxu0 0.0
  %1022 = vmatpush1.msra.mxu0 0.0
  %1023 = vmatprep.subr.mxu0 0.0
  %1024 = vmatpush1.msra.mxu0 0.0
  %1025 = vmatprep.subr.mxu0 0.0
  %1026 = vmatpush1.msra.mxu0 0.0
  %1027 = vmatprep.subr.mxu0 0.0
  %1028 = vmatpush1.msra.mxu0 0.0
  %1029 = vmatprep.subr.mxu0 0.0
  %1030 = vmatpush1.msra.mxu0 0.0
  %1031 = vmatprep.subr.mxu0 0.0
  %1032 = vmatpush1.msra.mxu0 0.0
  %1033 = vmatprep.subr.mxu0 0.0
  %1034 = vmatpush1.msra.mxu0 0.0
  %1035 = vmatprep.subr.mxu0 0.0
  %1036 = vmatpush1.msra.mxu0 0.0
  %1037 = vmatprep.subr.mxu0 0.0
  %1038 = vmatpush1.msra.mxu0 0.0
  %1039 = vmatprep.subr.mxu0 0.0
  %1040 = vmatpush1.msra.mxu0 0.0
  %1041 = vmatprep.subr.mxu0 0.0
  %1042 = vmatpush1.msra.mxu0 0.0
  %1043 = vmatprep.subr.mxu0 0.0
  %1044 = vmatpush1.msra.mxu0 0.0
  %1045 = vmatprep.subr.mxu0 0.0
  %1046 = vmatpush1.msra.mxu0 0.0
  %1047 = vmatprep.subr.mxu0 0.0
  %1048 = vmatpush1.msra.mxu0 0.0
  %1049 = vmatprep.subr.mxu0 0.0
  %1050 = vmatpush1.msra.mxu0 0.0
  %1051 = vmatprep.subr.mxu0 0.0
  %1052 = vmatpush1.msra.mxu0 0.0
  %1053 = vmatprep.subr.mxu0 0.0
  %1054 = vmatpush1.msra.mxu0 0.0
  %1055 = vmatprep.subr.mxu0 0.0
  %1056 = vmatpush1.msra.mxu0 0.0
  %1057 = vmatprep.subr.mxu0 0.0
  %1058 = vmatpush1.msra.mxu0 0.0
  %1059 = vmatprep.subr.mxu0 0.0
  %1060 = vmatpush1.msra.mxu0 0.0
  %1061 = vmatprep.subr.mxu0 0.0
  %1062 = vmatpush1.msra.mxu0 0.0
  %1063 = vmatprep.subr.mxu0 0.0
  %1064 = vmatpush1.msra.mxu0 0.0
  %1065 = vmatprep.mubr.f32.mxu0 0.0
  %1066 = vmatmul.mubr.f32.gmra.mrb[0].mxu0 %v999
  %v1067 = vpop.f32.mrb[0].mxu0
  %v1068 = vadd.f32 %v688, %v1067
  %v1069 = vpop.f32.mrb[0].mxu0
  %1070 = vdwg.mxu0
  %v1072 = vrot.slane %v1068, 4
  %v1074 = vadd.f32 %v677, %v1072
  %v1075 = vxor.u32 %v1074, 2147483648
  %v1076 = vmul.f32 %v1075, 1.442695
  %v1077 = vpow.pop %v1076
  %v1078 = vadd.f32 %v1077, 1.0
  %v1079 = vrcp.pop %v1078
  %v1080 = vmul.f32 1.0, %v1079
  %1081 = vrot.lane.b32.xlu0 %v1072, 64
  %v1082 = vpop.permute.xlu0 %1081
  %v1084 = vmul.f32 %v1080, %v1082
  %1086 = vrot.lane.b32.xlu0 %v1084, 64
  %v1087 = vpop.permute.xlu0 %1086
  %v1089 = vadd.f32 %v677, %v1087
  %v1090 = vtanh.pop %v1089
  %v1091 = vsub.f32 1.0, %v1080
  %1093 = vrot.lane.b32.xlu0 %v1090, 96
  %v1094 = vpop.permute.xlu0 %1093
  %v1096 = vmul.f32 %v1091, %v1094
  %v1097 = vrot.slane %v995, 4
  %v1099 = vmul.f32 %v1080, %v1097
  %v1100 = vadd.f32 %v1096, %v1099
  %1102 = vrot.lane.b32.xlu0 %v995, 32
  %v1103 = vpop.permute.xlu0 %1102
  %v1106 = vrot.slane %v1100, 4
  %1107 = vrot.lane.b32.xlu0 %v1106, 64
  %v1108 = vpop.permute.xlu0 %1107
  %v1110 = vsel %vm55, %v790, %v894
  %vm1111 = vcmask 523264
  %v1112 = vsel %vm1111, %v1110, %v1103
  %vm1113 = vcmask 785408
  %v1114 = vsel %vm1113, %v1112, %v1108
  %v1115 = vld [vmem:[%s2 + $0xa0] sm:$0xff]
  %v1116 = vld [vmem:[%s2 + $0xa8] sm:$0xff]
  %v1117 = vld [vmem:[%s2 + $0xb0] sm:$0xff]
  %v1118 = vld [vmem:[%s2 + $0xb8] sm:$0xff]
  %v1119 = vld [vmem:[%s2 + $0xc0] sm:$0xff]
  %v1120 = vld [vmem:[%s2 + $0xc8] sm:$0xff]
  %v1121 = vld [vmem:[%s2 + $0xd0] sm:$0xff]
  %v1122 = vld [vmem:[%s2 + $0xd8] sm:$0xff]
  %v1123 = vld [vmem:[%s2 + $0xe0] sm:$0xff]
  %v1124 = vld [vmem:[%s2 + $0xe8] sm:$0xff]
  %v1125 = vld [vmem:[%s2 + $0xf0] sm:$0xff]
  %v1126 = vld [vmem:[%s2 + $0xf8] sm:$0xff]
  %v1127 = vld [vmem:[%s2 + $0x100] sm:$0xff]
  %v1128 = vld [vmem:[%s2 + $0x108] sm:$0xff]
  %v1129 = vld [vmem:[%s2 + $0x110] sm:$0xff]
  %v1130 = vld [vmem:[%s2 + $0x118] sm:$0xff]
  %v1131 = vld [vmem:[%s2 + $0x120] sm:$0x1]
  %v1133 = vrot.slane %v573, 1
  %1134 = vrot.lane.b32.xlu0 %v1133, 32
  %v1135 = vpop.permute.xlu0 %1134
  %v1137 = vrot.slane %v573, 2
  %1138 = vrot.lane.b32.xlu0 %v1137, 64
  %v1139 = vpop.permute.xlu0 %1138
  %v1141 = vrot.slane %v573, 3
  %1142 = vrot.lane.b32.xlu0 %v1141, 96
  %v1143 = vpop.permute.xlu0 %1142
  %v1145 = vsel %vm55, %v573, %v1135
  %v1146 = vsel %vm1111, %v1145, %v1139
  %v1147 = vsel %vm1113, %v1146, %v1143
  %v1148 = vlaneseq
  %v1149 = vshrl.u32 %v1148, 7
  %v1150 = vsub.s32 0, %v1149
  %v1151 = vrot.slane %v1131, %v1150
  %1152 = vmatprep.subr.mxu0 0.0
  %1153 = vmatpush1.msra.mxu0 %v1115
  %1154 = vmatprep.subr.mxu0 0.0
  %1155 = vmatpush1.msra.mxu0 %v1116
  %1156 = vmatprep.subr.mxu0 0.0
  %1157 = vmatpush1.msra.mxu0 %v1117
  %1158 = vmatprep.subr.mxu0 0.0
  %1159 = vmatpush1.msra.mxu0 %v1118
  %1160 = vmatprep.subr.mxu0 0.0
  %1161 = vmatpush1.msra.mxu0 %v1119
  %1162 = vmatprep.subr.mxu0 0.0
  %1163 = vmatpush1.msra.mxu0 %v1120
  %1164 = vmatprep.subr.mxu0 0.0
  %1165 = vmatpush1.msra.mxu0 %v1121
  %1166 = vmatprep.subr.mxu0 0.0
  %1167 = vmatpush1.msra.mxu0 %v1122
  %1168 = vmatprep.subr.mxu0 0.0
  %1169 = vmatpush1.msra.mxu0 %v1123
  %1170 = vmatprep.subr.mxu0 0.0
  %1171 = vmatpush1.msra.mxu0 %v1124
  %1172 = vmatprep.subr.mxu0 0.0
  %1173 = vmatpush1.msra.mxu0 %v1125
  %1174 = vmatprep.subr.mxu0 0.0
  %1175 = vmatpush1.msra.mxu0 %v1126
  %1176 = vmatprep.subr.mxu0 0.0
  %1177 = vmatpush1.msra.mxu0 %v1127
  %1178 = vmatprep.subr.mxu0 0.0
  %1179 = vmatpush1.msra.mxu0 %v1128
  %1180 = vmatprep.subr.mxu0 0.0
  %1181 = vmatpush1.msra.mxu0 %v1129
  %1182 = vmatprep.subr.mxu0 0.0
  %1183 = vmatpush1.msra.mxu0 %v1130
  %1184 = vmatprep.subr.mxu0 0.0
  %1185 = vmatpush1.msra.mxu0 0.0
  %1186 = vmatprep.subr.mxu0 0.0
  %1187 = vmatpush1.msra.mxu0 0.0
  %1188 = vmatprep.subr.mxu0 0.0
  %1189 = vmatpush1.msra.mxu0 0.0
  %1190 = vmatprep.subr.mxu0 0.0
  %1191 = vmatpush1.msra.mxu0 0.0
  %1192 = vmatprep.subr.mxu0 0.0
  %1193 = vmatpush1.msra.mxu0 0.0
  %1194 = vmatprep.subr.mxu0 0.0
  %1195 = vmatpush1.msra.mxu0 0.0
  %1196 = vmatprep.subr.mxu0 0.0
  %1197 = vmatpush1.msra.mxu0 0.0
  %1198 = vmatprep.subr.mxu0 0.0
  %1199 = vmatpush1.msra.mxu0 0.0
  %1200 = vmatprep.subr.mxu0 0.0
  %1201 = vmatpush1.msra.mxu0 0.0
  %1202 = vmatprep.subr.mxu0 0.0
  %1203 = vmatpush1.msra.mxu0 0.0
  %1204 = vmatprep.subr.mxu0 0.0
  %1205 = vmatpush1.msra.mxu0 0.0
  %1206 = vmatprep.subr.mxu0 0.0
  %1207 = vmatpush1.msra.mxu0 0.0
  %1208 = vmatprep.subr.mxu0 0.0
  %1209 = vmatpush1.msra.mxu0 0.0
  %1210 = vmatprep.subr.mxu0 0.0
  %1211 = vmatpush1.msra.mxu0 0.0
  %1212 = vmatprep.subr.mxu0 0.0
  %1213 = vmatpush1.msra.mxu0 0.0
  %1214 = vmatprep.subr.mxu0 0.0
  %1215 = vmatpush1.msra.mxu0 0.0
  %1216 = vmatprep.mubr.f32.mxu0 0.0
  %1217 = vmatmul.mubr.f32.gmra.mrb[0].mxu0 %v1114
  %v1218 = vpop.f32.mrb[0].mxu0
  %v1219 = vadd.f32 %v1151, %v1218
  %v1220 = vpop.f32.mrb[0].mxu0
  %1221 = vdwg.mxu0
  %v1222 = vlaneseq
  %v1223 = vshrl.u32 %v1222, 7
  %v1224 = vsub.s32 0, %v1223
  %v1225 = vrot.slane %v1147, %v1224
  %v1226 = vadd.f32 %v1219, %v1225
  %1227 = vst [vmem:[%s3] sm:$0xf] %v1226
  // Predicated region
  $region14: #{forward.1} parent=0 // pred_check
    _
  $region15: #{forward.1} parent=0 // pred_check_branch
    %1229 = sbr.rel (0) target = $region17
  $region16: #{forward.1} parent=0 // pred_region
    _
  $region17: #{forward.1} parent=0 // pred_fallthru
    _
  // Predicated region
  $region18: #{forward.1} parent=0 // pred_check
    _
  $region19: #{forward.1} parent=0 // pred_check_branch
    %1231 = sbr.rel (0) target = $region21
  $region20: #{forward.1} parent=0 // pred_region
    _
  $region21: #{forward.1} parent=0 // pred_fallthru
    _

</llo_original>
